<compile_context>
chip_gen: v6e
topology: v6e:2x2x1
jax: 0.10.0
libtpu: 0.0.40
codegen_flags: <defaults>
</compile_context>

<pallas_src>
import functools

import jax
import jax.numpy as jnp
from jax.experimental import pallas as pl
from jax.experimental.pallas import tpu as pltpu

_LANE = 128


def _hardswish(x):
    return x * jnp.clip(x + 3.0, 0.0, 6.0) * (1.0 / 6.0)


def _round_up(x, m):
    return (x + m - 1) // m * m


def _pad_last(a, target):
    pad = target - a.shape[-1]
    if pad == 0:
        return a
    cfg = [(0, 0)] * (a.ndim - 1) + [(0, pad)]
    return jnp.pad(a, cfg)


def dsconv_kernel(xpad_ref, dw_ref, bn1b_ref, pw_ref, bn2b_ref,
                  f1w_ref, f1b_ref, f2w_ref, f2b_ref, o_ref, *, use_residual):
    H, W, Cout = o_ref.shape                      # batch dim is squeezed away
    Cin = xpad_ref.shape[-1]
    hw = H * W

    dw = dw_ref[...]                              # (9, Cin), BN1 scale already folded in
    bias1 = bn1b_ref[...]                         # (1, Cin),  BN1 bias

    # --- depthwise 3x3, stride 1 -------------------------------------------------
    # One full-width slab load per dy (dy offsets a non-minor axis -> free address
    # offset); dx taps are shifted in-register selects of the loaded slab.  The
    # accumulator starts as tap(0,0)*w + BN1 bias: no zero-init / bias passes.
    acc = None
    for dy in range(3):
        slab = xpad_ref[dy:dy + H, :, :].astype(jnp.float32)   # (H, W+2, Cin)
        for dx in range(3):
            contrib = slab[:, dx:dx + W, :] * dw[dy * 3 + dx]
            acc = (contrib + bias1) if acc is None else (acc + contrib)

    # NOTE: the (H, W, C) -> (H*W, C) reshape is a free relayout only because the
    # wrapper guarantees W % 8 == 0 spatial blocks; otherwise keep the 3-D form.
    a = _hardswish(acc).reshape(hw, Cin)                        # BN1 bias + hswish done

    # --- pointwise 1x1 conv == channel matmul on the MXU (bf16 operands, f32 acc) --
    y = jnp.dot(a.astype(jnp.bfloat16), pw_ref[...],
                preferred_element_type=jnp.float32)             # (hw, Cout)
    y = _hardswish(y + bn2b_ref[...])                           # BN2 bias + hswish

    # --- SE block (padded channels are exactly 0 -> pool / gate stay correct) -----
    pooled = jnp.mean(y, axis=0, keepdims=True)                 # (1, Cout) global pool
    h = jnp.dot(pooled, f1w_ref[...], preferred_element_type=jnp.float32) + f1b_ref[...]
    h = jnp.maximum(h, 0.0)                                     # ReLU
    s = jax.nn.sigmoid(
        jnp.dot(h, f2w_ref[...], preferred_element_type=jnp.float32) + f2b_ref[...])

    # --- SE gate + residual fused into one pass over y ----------------------------
    if use_residual:
        # Re-read the center tap here (vld slots have slack) instead of keeping it
        # live across the MXU / SE phase, which would force spill store+reload.
        resid = xpad_ref[1:1 + H, 1:1 + W, :].astype(jnp.float32).reshape(hw, Cin)
        out = y * s + resid
    else:
        out = y * s

    o_ref[...] = out.reshape(H, W, Cout)


def _vmem_limit_bytes(H, W, Cin_p, Cout_p, hid_p, act_bytes):
    """Explicit VMEM budget: double-buffered blocks + constants + live intermediates."""
    in_blk = (H + 2) * (W + 2) * Cin_p * act_bytes
    out_blk = H * W * Cout_p * 4
    consts = ((9 + 2) * Cin_p + 3 * Cout_p + 2 * hid_p) * 4 \
             + (Cout_p * hid_p + hid_p * Cout_p) * 4 + Cin_p * Cout_p * 2
    live = 4 * H * W * max(Cin_p, Cout_p) * 4          # acc / a / y / out values
    total = 2 * (in_blk + out_blk + consts) + live
    return int(min(max(total * 1.25, 16 * 2**20), 64 * 2**20))


def dsconv_forward(x_nchw, params, use_residual=True, act_dtype=jnp.float32):
    """DSConv forward.  `act_dtype=jnp.bfloat16` halves activation HBM/DMA traffic and
    is recommended on v6e/v7x (slightly wider error, incl. a bf16-quantised residual);
    the default f32 is exact w.r.t. the reference and v5e-friendly."""
    N, Cin, H, W = x_nchw.shape
    Cout = params["pw"].shape[1]
    hidden = params["fc1_w"].shape[1]
    if use_residual:
        assert Cin == Cout, "residual path requires in_c == out_c (stride 1)"
    assert W % 8 == 0, "spatial width must be a multiple of 8 (free (H,W,C)->(HW,C) relayout)"

    Cin_p = _round_up(Cin, _LANE)
    Cout_p = _round_up(Cout, _LANE)
    hid_p = _round_up(hidden, _LANE)

    # ---- fold BN scales into the conv weights; zero-pad channels to 128 lanes ----
    # (In a real model these folded/padded weights would be precomputed once.)
    dw_f = params["dw"] * params["bn1_s"][0][None, None, :]              # (3,3,Cin)
    dw_p = _pad_last(dw_f.reshape(9, Cin), Cin_p)                        # (9,Cin_p)
    bn1b_p = _pad_last(params["bn1_b"], Cin_p)                           # (1,Cin_p)

    pw_f = params["pw"] * params["bn2_s"][0][None, :]                    # (Cin,Cout)
    pw_p = jnp.pad(pw_f, ((0, Cin_p - Cin), (0, Cout_p - Cout))).astype(jnp.bfloat16)
    bn2b_p = _pad_last(params["bn2_b"], Cout_p)                          # (1,Cout_p)

    f1w_p = jnp.pad(params["fc1_w"], ((0, Cout_p - Cout), (0, hid_p - hidden)))
    f1b_p = _pad_last(params["fc1_b"], hid_p)
    f2w_p = jnp.pad(params["fc2_w"], ((0, hid_p - hidden), (0, Cout_p - Cout)))
    f2b_p = _pad_last(params["fc2_b"], Cout_p)

    # ---- NCHW -> NHWC; one pad pass does the 3x3 halo AND channel padding ----
    x = jnp.transpose(x_nchw, (0, 2, 3, 1)).astype(act_dtype)
    xpad = jnp.pad(x, ((0, 0), (1, 1), (1, 1), (0, Cin_p - Cin)))

    kernel = functools.partial(dsconv_kernel, use_residual=use_residual)

    def bcast(shape):
        return pl.BlockSpec(shape, lambda n, _nd=len(shape): (0,) * _nd)

    hw = H * W
    cost = pl.CostEstimate(
        flops=N * (2 * hw * 9 * Cin_p + 2 * hw * Cin_p * Cout_p
                   + 2 * Cout_p * hid_p + 2 * hid_p * Cout_p
                   + 16 * hw * Cout_p + 8 * hw * Cin_p),
        transcendentals=N * Cout_p,
        bytes_accessed=(xpad.dtype.itemsize * xpad.size + 4 * N * hw * Cout_p
                        + 4 * (dw_p.size + bn1b_p.size + bn2b_p.size + f1w_p.size
                               + f1b_p.size + f2w_p.size + f2b_p.size)
                        + 2 * pw_p.size),
    )

    vmem_limit = _vmem_limit_bytes(H, W, Cin_p, Cout_p, hid_p, xpad.dtype.itemsize)

    out = pl.pallas_call(
        kernel,
        out_shape=jax.ShapeDtypeStruct((N, H, W, Cout_p), jnp.float32),
        grid_spec=pltpu.PrefetchScalarGridSpec(
            num_scalar_prefetch=0,
            grid=(N,),
            in_specs=[
                # activation block: batch dim squeezed out of the kernel ref
                pl.BlockSpec((pl.Squeezed(), H + 2, W + 2, Cin_p),
                             lambda n: (n, 0, 0, 0)),
                # constant weights / biases (lane-padded).  Footprint is tiny at these
                # widths; for large weight tiles single-buffer them (see TODO above).
                bcast((9, Cin_p)),                      # folded depthwise weights
                bcast((1, Cin_p)),                      # folded BN1 bias
                bcast((Cin_p, Cout_p)),                 # folded pointwise weights (bf16)
                bcast((1, Cout_p)),                     # folded BN2 bias
                bcast((Cout_p, hid_p)), bcast((1, hid_p)),   # SE fc1
                bcast((hid_p, Cout_p)), bcast((1, Cout_p)),  # SE fc2
            ],
            out_specs=pl.BlockSpec((pl.Squeezed(), H, W, Cout_p),
                                   lambda n: (n, 0, 0, 0)),
        ),
        compiler_params=pltpu.CompilerParams(
            dimension_semantics=("parallel",),
            vmem_limit_bytes=vmem_limit,
        ),
        cost_estimate=cost,
    )(xpad, dw_p, bn1b_p, pw_p, bn2b_p, f1w_p, f1b_p, f2w_p, f2b_p)

    out = out[..., :Cout]                          # strip channel padding
    return jnp.transpose(out, (0, 3, 1, 2))        # back to NCHW


def init_params(key, in_c, out_c, se_ratio=0.25):
    hidden = max(1, int(out_c * se_ratio))
    eps = 1e-5
    ks = jax.random.split(key, 12)

    dw = 0.1 * jax.random.normal(ks[0], (3, 3, in_c), jnp.float32)
    pw = 0.1 * jax.random.normal(ks[1], (in_c, out_c), jnp.float32)

    def folded_bn(kg, kb, km, kv, c):
        gamma = 1.0 + 0.1 * jax.random.normal(kg, (c,), jnp.float32)
        beta = 0.1 * jax.random.normal(kb, (c,), jnp.float32)
        mean = 0.05 * jax.random.normal(km, (c,), jnp.float32)
        var = 0.5 + jax.nn.softplus(jax.random.normal(kv, (c,), jnp.float32))
        scale = gamma / jnp.sqrt(var + eps)
        bias = beta - mean * scale
        return scale.reshape(1, c), bias.reshape(1, c)

    bn1_s, bn1_b = folded_bn(ks[2], ks[3], ks[4], ks[5], in_c)
    bn2_s, bn2_b = folded_bn(ks[6], ks[7], ks[8], ks[9], out_c)

    fc1_w = 0.2 * jax.random.normal(ks[10], (out_c, hidden), jnp.float32)
    fc1_b = jnp.linspace(-0.1, 0.1, hidden, dtype=jnp.float32).reshape(1, hidden)
    fc2_w = 0.2 * jax.random.normal(ks[11], (hidden, out_c), jnp.float32)
    fc2_b = jnp.linspace(-0.05, 0.05, out_c, dtype=jnp.float32).reshape(1, out_c)

    return dict(dw=dw, pw=pw, bn1_s=bn1_s, bn1_b=bn1_b, bn2_s=bn2_s, bn2_b=bn2_b,
                fc1_w=fc1_w, fc1_b=fc1_b, fc2_w=fc2_w, fc2_b=fc2_b)


def ref_forward(x, p, use_residual=True):
    """Pure-JAX reference mirroring the PyTorch DSConv forward (eval-mode BN)."""
    N, Cin, H, W = x.shape
    w_dw = jnp.transpose(p["dw"], (2, 0, 1))[:, None, :, :]          # (Cin,1,3,3)
    y = jax.lax.conv_general_dilated(
        x, w_dw, window_strides=(1, 1), padding="SAME",
        dimension_numbers=("NCHW", "OIHW", "NCHW"), feature_group_count=Cin)
    y = _hardswish(y * p["bn1_s"][0][None, :, None, None]
                   + p["bn1_b"][0][None, :, None, None])
    w_pw = jnp.transpose(p["pw"], (1, 0))[:, :, None, None]          # (Cout,Cin,1,1)
    y = jax.lax.conv_general_dilated(
        y, w_pw, window_strides=(1, 1), padding="SAME",
        dimension_numbers=("NCHW", "OIHW", "NCHW"))
    y = _hardswish(y * p["bn2_s"][0][None, :, None, None]
                   + p["bn2_b"][0][None, :, None, None])
    pooled = jnp.mean(y, axis=(2, 3))                                 # (N, Cout)
    h = jnp.maximum(pooled @ p["fc1_w"] + p["fc1_b"], 0.0)
    s = jax.nn.sigmoid(h @ p["fc2_w"] + p["fc2_b"])
    y = y * s[:, :, None, None]
    return y + x if use_residual else y


if __name__ == "__main__":
    key = jax.random.PRNGKey(0)
    kx, kp = jax.random.split(key)

    N, C, H, W = 2, 16, 16, 16          # in_c == out_c, stride 1 -> residual path
    x = jax.random.normal(kx, (N, C, H, W), jnp.float32)
    params = init_params(kp, C, C, se_ratio=0.25)

    out = jax.block_until_ready(dsconv_forward(x, params, use_residual=True))
    ref = ref_forward(x, params, use_residual=True)

    max_err = float(jnp.max(jnp.abs(out - ref)))
    assert out.shape == (N, C, H, W)
    # Pointwise conv uses bf16 MXU operands -> slightly wider tolerance than pure f32.
    assert jnp.allclose(out, ref, atol=5e-3, rtol=5e-3), f"max abs err {max_err}"

    print("KERNEL_OK")
</pallas_src>

<mosaic_0001>
module attributes {stable_mosaic.version = 11 : i64} {
  func.func @dsconv_kernel(%arg0: i32, %arg1: memref<1x18x18x128xf32, #tpu.memory_space<vmem>>, %arg2: memref<9x128xf32, #tpu.memory_space<vmem>>, %arg3: memref<1x128xf32, #tpu.memory_space<vmem>>, %arg4: memref<128x128xbf16, #tpu.memory_space<vmem>>, %arg5: memref<1x128xf32, #tpu.memory_space<vmem>>, %arg6: memref<128x128xf32, #tpu.memory_space<vmem>>, %arg7: memref<1x128xf32, #tpu.memory_space<vmem>>, %arg8: memref<128x128xf32, #tpu.memory_space<vmem>>, %arg9: memref<1x128xf32, #tpu.memory_space<vmem>>, %arg10: memref<1x16x16x128xf32, #tpu.memory_space<vmem>>) attributes {dimension_semantics = [#tpu.dimension_semantics<parallel>], iteration_bounds = array<i64: 2>, scalar_prefetch = 0 : i64, scratch_operands = 0 : i64, tpu.core_type = #tpu.core_type<tc>, window_params = [{transform_indices = @transform_0, window_bounds = array<i64: 1, 18, 18, 128>}, {pipeline_mode = #tpu.pipeline_mode<synchronous>, transform_indices = @transform_1, window_bounds = array<i64: 9, 128>}, {pipeline_mode = #tpu.pipeline_mode<synchronous>, transform_indices = @transform_2, window_bounds = array<i64: 1, 128>}, {pipeline_mode = #tpu.pipeline_mode<synchronous>, transform_indices = @transform_3, window_bounds = array<i64: 128, 128>}, {pipeline_mode = #tpu.pipeline_mode<synchronous>, transform_indices = @transform_4, window_bounds = array<i64: 1, 128>}, {pipeline_mode = #tpu.pipeline_mode<synchronous>, transform_indices = @transform_5, window_bounds = array<i64: 128, 128>}, {pipeline_mode = #tpu.pipeline_mode<synchronous>, transform_indices = @transform_6, window_bounds = array<i64: 1, 128>}, {pipeline_mode = #tpu.pipeline_mode<synchronous>, transform_indices = @transform_7, window_bounds = array<i64: 128, 128>}, {pipeline_mode = #tpu.pipeline_mode<synchronous>, transform_indices = @transform_8, window_bounds = array<i64: 1, 128>}, {transform_indices = @transform_9, window_bounds = array<i64: 1, 16, 16, 128>}]} {
    %c0 = arith.constant 0 : index
    %c0_0 = arith.constant 0 : index
    %0 = vector.load %arg2[%c0, %c0_0] : memref<9x128xf32, #tpu.memory_space<vmem>>, vector<9x128xf32>
    %c0_1 = arith.constant 0 : index
    %c0_2 = arith.constant 0 : index
    %1 = vector.load %arg3[%c0_1, %c0_2] : memref<1x128xf32, #tpu.memory_space<vmem>>, vector<1x128xf32>
    %c0_3 = arith.constant 0 : index
    %c0_4 = arith.constant 0 : index
    %c0_5 = arith.constant 0 : index
    %c0_6 = arith.constant 0 : index
    %2 = vector.load %arg1[%c0_3, %c0_4, %c0_5, %c0_6] : memref<1x18x18x128xf32, #tpu.memory_space<vmem>>, vector<1x16x18x128xf32>
    %3 = vector.shape_cast %2 : vector<1x16x18x128xf32> to vector<16x18x128xf32>
    %4 = vector.extract_strided_slice %3 {offsets = [0, 0, 0], sizes = [16, 16, 128], strides = [1, 1, 1]} : vector<16x18x128xf32> to vector<16x16x128xf32>
    %5 = vector.extract_strided_slice %0 {offsets = [0, 0], sizes = [1, 128], strides = [1, 1]} : vector<9x128xf32> to vector<1x128xf32>
    %6 = vector.shape_cast %5 : vector<1x128xf32> to vector<128xf32>
    %7 = vector.shape_cast %6 : vector<128xf32> to vector<1x1x128xf32>
    %8 = vector.broadcast %7 : vector<1x1x128xf32> to vector<16x16x128xf32>
    %9 = arith.mulf %4, %8 : vector<16x16x128xf32>
    %10 = vector.shape_cast %1 : vector<1x128xf32> to vector<1x1x128xf32>
    %11 = vector.broadcast %10 : vector<1x1x128xf32> to vector<16x16x128xf32>
    %12 = arith.addf %9, %11 : vector<16x16x128xf32>
    %13 = vector.extract_strided_slice %3 {offsets = [0, 1, 0], sizes = [16, 16, 128], strides = [1, 1, 1]} : vector<16x18x128xf32> to vector<16x16x128xf32>
    %14 = vector.extract_strided_slice %0 {offsets = [1, 0], sizes = [1, 128], strides = [1, 1]} : vector<9x128xf32> to vector<1x128xf32>
    %15 = vector.shape_cast %14 : vector<1x128xf32> to vector<128xf32>
    %16 = vector.shape_cast %15 : vector<128xf32> to vector<1x1x128xf32>
    %17 = vector.broadcast %16 : vector<1x1x128xf32> to vector<16x16x128xf32>
    %18 = arith.mulf %13, %17 : vector<16x16x128xf32>
    %19 = arith.addf %12, %18 : vector<16x16x128xf32>
    %20 = vector.extract_strided_slice %3 {offsets = [0, 2, 0], sizes = [16, 16, 128], strides = [1, 1, 1]} : vector<16x18x128xf32> to vector<16x16x128xf32>
    %21 = vector.extract_strided_slice %0 {offsets = [2, 0], sizes = [1, 128], strides = [1, 1]} : vector<9x128xf32> to vector<1x128xf32>
    %22 = vector.shape_cast %21 : vector<1x128xf32> to vector<128xf32>
    %23 = vector.shape_cast %22 : vector<128xf32> to vector<1x1x128xf32>
    %24 = vector.broadcast %23 : vector<1x1x128xf32> to vector<16x16x128xf32>
    %25 = arith.mulf %20, %24 : vector<16x16x128xf32>
    %26 = arith.addf %19, %25 : vector<16x16x128xf32>
    %c0_7 = arith.constant 0 : index
    %c1 = arith.constant 1 : index
    %c0_8 = arith.constant 0 : index
    %c0_9 = arith.constant 0 : index
    %27 = vector.load %arg1[%c0_7, %c1, %c0_8, %c0_9] : memref<1x18x18x128xf32, #tpu.memory_space<vmem>>, vector<1x16x18x128xf32>
    %28 = vector.shape_cast %27 : vector<1x16x18x128xf32> to vector<16x18x128xf32>
    %29 = vector.extract_strided_slice %28 {offsets = [0, 0, 0], sizes = [16, 16, 128], strides = [1, 1, 1]} : vector<16x18x128xf32> to vector<16x16x128xf32>
    %30 = vector.extract_strided_slice %0 {offsets = [3, 0], sizes = [1, 128], strides = [1, 1]} : vector<9x128xf32> to vector<1x128xf32>
    %31 = vector.shape_cast %30 : vector<1x128xf32> to vector<128xf32>
    %32 = vector.shape_cast %31 : vector<128xf32> to vector<1x1x128xf32>
    %33 = vector.broadcast %32 : vector<1x1x128xf32> to vector<16x16x128xf32>
    %34 = arith.mulf %29, %33 : vector<16x16x128xf32>
    %35 = arith.addf %26, %34 : vector<16x16x128xf32>
    %36 = vector.extract_strided_slice %28 {offsets = [0, 1, 0], sizes = [16, 16, 128], strides = [1, 1, 1]} : vector<16x18x128xf32> to vector<16x16x128xf32>
    %37 = vector.extract_strided_slice %0 {offsets = [4, 0], sizes = [1, 128], strides = [1, 1]} : vector<9x128xf32> to vector<1x128xf32>
    %38 = vector.shape_cast %37 : vector<1x128xf32> to vector<128xf32>
    %39 = vector.shape_cast %38 : vector<128xf32> to vector<1x1x128xf32>
    %40 = vector.broadcast %39 : vector<1x1x128xf32> to vector<16x16x128xf32>
    %41 = arith.mulf %36, %40 : vector<16x16x128xf32>
    %42 = arith.addf %35, %41 : vector<16x16x128xf32>
    %43 = vector.extract_strided_slice %28 {offsets = [0, 2, 0], sizes = [16, 16, 128], strides = [1, 1, 1]} : vector<16x18x128xf32> to vector<16x16x128xf32>
    %44 = vector.extract_strided_slice %0 {offsets = [5, 0], sizes = [1, 128], strides = [1, 1]} : vector<9x128xf32> to vector<1x128xf32>
    %45 = vector.shape_cast %44 : vector<1x128xf32> to vector<128xf32>
    %46 = vector.shape_cast %45 : vector<128xf32> to vector<1x1x128xf32>
    %47 = vector.broadcast %46 : vector<1x1x128xf32> to vector<16x16x128xf32>
    %48 = arith.mulf %43, %47 : vector<16x16x128xf32>
    %49 = arith.addf %42, %48 : vector<16x16x128xf32>
    %c0_10 = arith.constant 0 : index
    %c2 = arith.constant 2 : index
    %c0_11 = arith.constant 0 : index
    %c0_12 = arith.constant 0 : index
    %50 = vector.load %arg1[%c0_10, %c2, %c0_11, %c0_12] : memref<1x18x18x128xf32, #tpu.memory_space<vmem>>, vector<1x16x18x128xf32>
    %51 = vector.shape_cast %50 : vector<1x16x18x128xf32> to vector<16x18x128xf32>
    %52 = vector.extract_strided_slice %51 {offsets = [0, 0, 0], sizes = [16, 16, 128], strides = [1, 1, 1]} : vector<16x18x128xf32> to vector<16x16x128xf32>
    %53 = vector.extract_strided_slice %0 {offsets = [6, 0], sizes = [1, 128], strides = [1, 1]} : vector<9x128xf32> to vector<1x128xf32>
    %54 = vector.shape_cast %53 : vector<1x128xf32> to vector<128xf32>
    %55 = vector.shape_cast %54 : vector<128xf32> to vector<1x1x128xf32>
    %56 = vector.broadcast %55 : vector<1x1x128xf32> to vector<16x16x128xf32>
    %57 = arith.mulf %52, %56 : vector<16x16x128xf32>
    %58 = arith.addf %49, %57 : vector<16x16x128xf32>
    %59 = vector.extract_strided_slice %51 {offsets = [0, 1, 0], sizes = [16, 16, 128], strides = [1, 1, 1]} : vector<16x18x128xf32> to vector<16x16x128xf32>
    %60 = vector.extract_strided_slice %0 {offsets = [7, 0], sizes = [1, 128], strides = [1, 1]} : vector<9x128xf32> to vector<1x128xf32>
    %61 = vector.shape_cast %60 : vector<1x128xf32> to vector<128xf32>
    %62 = vector.shape_cast %61 : vector<128xf32> to vector<1x1x128xf32>
    %63 = vector.broadcast %62 : vector<1x1x128xf32> to vector<16x16x128xf32>
    %64 = arith.mulf %59, %63 : vector<16x16x128xf32>
    %65 = arith.addf %58, %64 : vector<16x16x128xf32>
    %66 = vector.extract_strided_slice %51 {offsets = [0, 2, 0], sizes = [16, 16, 128], strides = [1, 1, 1]} : vector<16x18x128xf32> to vector<16x16x128xf32>
    %67 = vector.extract_strided_slice %0 {offsets = [8, 0], sizes = [1, 128], strides = [1, 1]} : vector<9x128xf32> to vector<1x128xf32>
    %68 = vector.shape_cast %67 : vector<1x128xf32> to vector<128xf32>
    %69 = vector.shape_cast %68 : vector<128xf32> to vector<1x1x128xf32>
    %70 = vector.broadcast %69 : vector<1x1x128xf32> to vector<16x16x128xf32>
    %71 = arith.mulf %66, %70 : vector<16x16x128xf32>
    %72 = arith.addf %65, %71 : vector<16x16x128xf32>
    %cst = arith.constant 3.000000e+00 : f32
    %73 = vector.broadcast %cst : f32 to vector<16x16x128xf32>
    %74 = arith.addf %72, %73 : vector<16x16x128xf32>
    %cst_13 = arith.constant 0.000000e+00 : f32
    %cst_14 = arith.constant 6.000000e+00 : f32
    %75 = vector.broadcast %cst_13 : f32 to vector<16x16x128xf32>
    %76 = arith.maximumf %75, %74 : vector<16x16x128xf32>
    %77 = vector.broadcast %cst_14 : f32 to vector<16x16x128xf32>
    %78 = arith.minimumf %77, %76 : vector<16x16x128xf32>
    %79 = arith.mulf %72, %78 : vector<16x16x128xf32>
    %cst_15 = arith.constant 0.166666672 : f32
    %80 = vector.broadcast %cst_15 : f32 to vector<16x16x128xf32>
    %81 = arith.mulf %79, %80 : vector<16x16x128xf32>
    %82 = vector.shape_cast %81 : vector<16x16x128xf32> to vector<256x128xf32>
    %83 = arith.truncf %82 : vector<256x128xf32> to vector<256x128xbf16>
    %c0_16 = arith.constant 0 : index
    %c0_17 = arith.constant 0 : index
    %84 = vector.load %arg4[%c0_16, %c0_17] : memref<128x128xbf16, #tpu.memory_space<vmem>>, vector<128x128xbf16>
    %cst_18 = arith.constant dense<0.000000e+00> : vector<256x128xf32>
    %85 = tpu.matmul %83, %84, %cst_18 {dimension_numbers = #tpu.dot_dimension_numbers<[1], [0], [0], [1], [0, 0, 1, 1], [], []>} : vector<256x128xbf16>, vector<128x128xbf16>, vector<256x128xf32> -> vector<256x128xf32>
    %c0_19 = arith.constant 0 : index
    %c0_20 = arith.constant 0 : index
    %86 = vector.load %arg5[%c0_19, %c0_20] : memref<1x128xf32, #tpu.memory_space<vmem>>, vector<1x128xf32>
    %87 = vector.broadcast %86 : vector<1x128xf32> to vector<256x128xf32>
    %88 = arith.addf %85, %87 : vector<256x128xf32>
    %cst_21 = arith.constant 3.000000e+00 : f32
    %89 = vector.broadcast %cst_21 : f32 to vector<256x128xf32>
    %90 = arith.addf %88, %89 : vector<256x128xf32>
    %cst_22 = arith.constant 0.000000e+00 : f32
    %cst_23 = arith.constant 6.000000e+00 : f32
    %91 = vector.broadcast %cst_22 : f32 to vector<256x128xf32>
    %92 = arith.maximumf %91, %90 : vector<256x128xf32>
    %93 = vector.broadcast %cst_23 : f32 to vector<256x128xf32>
    %94 = arith.minimumf %93, %92 : vector<256x128xf32>
    %95 = arith.mulf %88, %94 : vector<256x128xf32>
    %cst_24 = arith.constant 0.166666672 : f32
    %96 = vector.broadcast %cst_24 : f32 to vector<256x128xf32>
    %97 = arith.mulf %95, %96 : vector<256x128xf32>
    %cst_25 = arith.constant dense<0.000000e+00> : vector<128xf32>
    %98 = vector.multi_reduction <add>, %97, %cst_25 [0] : vector<256x128xf32> to vector<128xf32>
    %99 = vector.shape_cast %98 : vector<128xf32> to vector<1x128xf32>
    %cst_26 = arith.constant 2.560000e+02 : f32
    %100 = vector.broadcast %cst_26 : f32 to vector<1x128xf32>
    %101 = arith.divf %99, %100 : vector<1x128xf32>
    %c0_27 = arith.constant 0 : index
    %c0_28 = arith.constant 0 : index
    %102 = vector.load %arg6[%c0_27, %c0_28] : memref<128x128xf32, #tpu.memory_space<vmem>>, vector<128x128xf32>
    %cst_29 = arith.constant dense<0.000000e+00> : vector<1x128xf32>
    %103 = tpu.matmul %101, %102, %cst_29 {dimension_numbers = #tpu.dot_dimension_numbers<[1], [0], [0], [1], [0, 0, 1, 1], [], []>} : vector<1x128xf32>, vector<128x128xf32>, vector<1x128xf32> -> vector<1x128xf32>
    %c0_30 = arith.constant 0 : index
    %c0_31 = arith.constant 0 : index
    %104 = vector.load %arg7[%c0_30, %c0_31] : memref<1x128xf32, #tpu.memory_space<vmem>>, vector<1x128xf32>
    %105 = arith.addf %103, %104 : vector<1x128xf32>
    %cst_32 = arith.constant 0.000000e+00 : f32
    %106 = vector.broadcast %cst_32 : f32 to vector<1x128xf32>
    %107 = arith.maximumf %105, %106 : vector<1x128xf32>
    %c0_33 = arith.constant 0 : index
    %c0_34 = arith.constant 0 : index
    %108 = vector.load %arg8[%c0_33, %c0_34] : memref<128x128xf32, #tpu.memory_space<vmem>>, vector<128x128xf32>
    %cst_35 = arith.constant dense<0.000000e+00> : vector<1x128xf32>
    %109 = tpu.matmul %107, %108, %cst_35 {dimension_numbers = #tpu.dot_dimension_numbers<[1], [0], [0], [1], [0, 0, 1, 1], [], []>} : vector<1x128xf32>, vector<128x128xf32>, vector<1x128xf32> -> vector<1x128xf32>
    %c0_36 = arith.constant 0 : index
    %c0_37 = arith.constant 0 : index
    %110 = vector.load %arg9[%c0_36, %c0_37] : memref<1x128xf32, #tpu.memory_space<vmem>>, vector<1x128xf32>
    %111 = arith.addf %109, %110 : vector<1x128xf32>
    %112 = arith.negf %111 : vector<1x128xf32>
    %113 = math.exp %112 : vector<1x128xf32>
    %cst_38 = arith.constant 1.000000e+00 : f32
    %114 = vector.broadcast %cst_38 : f32 to vector<1x128xf32>
    %115 = arith.addf %114, %113 : vector<1x128xf32>
    %116 = arith.divf %114, %115 : vector<1x128xf32>
    %c0_39 = arith.constant 0 : index
    %c1_40 = arith.constant 1 : index
    %c1_41 = arith.constant 1 : index
    %c0_42 = arith.constant 0 : index
    %117 = vector.load %arg1[%c0_39, %c1_40, %c1_41, %c0_42] : memref<1x18x18x128xf32, #tpu.memory_space<vmem>>, vector<1x16x16x128xf32>
    %118 = vector.shape_cast %117 : vector<1x16x16x128xf32> to vector<16x16x128xf32>
    %119 = vector.shape_cast %118 : vector<16x16x128xf32> to vector<256x128xf32>
    %120 = vector.broadcast %116 : vector<1x128xf32> to vector<256x128xf32>
    %121 = arith.mulf %97, %120 : vector<256x128xf32>
    %122 = arith.addf %121, %119 : vector<256x128xf32>
    %123 = vector.shape_cast %122 : vector<256x128xf32> to vector<16x16x128xf32>
    %c0_43 = arith.constant 0 : index
    %c0_44 = arith.constant 0 : index
    %c0_45 = arith.constant 0 : index
    %c0_46 = arith.constant 0 : index
    %124 = vector.load %arg10[%c0_43, %c0_44, %c0_45, %c0_46] : memref<1x16x16x128xf32, #tpu.memory_space<vmem>>, vector<1x16x16x128xf32>
    %125 = vector.shape_cast %124 : vector<1x16x16x128xf32> to vector<16x16x128xf32>
    %126 = vector.shape_cast %123 : vector<16x16x128xf32> to vector<1x16x16x128xf32>
    tpu.vector_store %arg10[%c0_43, %c0_44, %c0_45, %c0_46], %126 {strides = array<i32>} : memref<1x16x16x128xf32, #tpu.memory_space<vmem>>, vector<1x16x16x128xf32>,
    return
  }
  func.func @transform_0(%arg0: i32) -> (i32, i32, i32, i32) {
    %c0_i32 = arith.constant 0 : i32
    %c0_i32_0 = arith.constant 0 : i32
    %c0_i32_1 = arith.constant 0 : i32
    %c0_i32_2 = arith.constant 0 : i32
    return %arg0, %c0_i32, %c0_i32_0, %c0_i32_1 : i32, i32, i32, i32
  }
  func.func @transform_1(%arg0: i32) -> (i32, i32) {
    %c0_i32 = arith.constant 0 : i32
    %c0_i32_0 = arith.constant 0 : i32
    %c0_i32_1 = arith.constant 0 : i32
    return %c0_i32, %c0_i32_0 : i32, i32
  }
  func.func @transform_2(%arg0: i32) -> (i32, i32) {
    %c0_i32 = arith.constant 0 : i32
    %c0_i32_0 = arith.constant 0 : i32
    %c0_i32_1 = arith.constant 0 : i32
    return %c0_i32, %c0_i32_0 : i32, i32
  }
  func.func @transform_3(%arg0: i32) -> (i32, i32) {
    %c0_i32 = arith.constant 0 : i32
    %c0_i32_0 = arith.constant 0 : i32
    %c0_i32_1 = arith.constant 0 : i32
    return %c0_i32, %c0_i32_0 : i32, i32
  }
  func.func @transform_4(%arg0: i32) -> (i32, i32) {
    %c0_i32 = arith.constant 0 : i32
    %c0_i32_0 = arith.constant 0 : i32
    %c0_i32_1 = arith.constant 0 : i32
    return %c0_i32, %c0_i32_0 : i32, i32
  }
  func.func @transform_5(%arg0: i32) -> (i32, i32) {
    %c0_i32 = arith.constant 0 : i32
    %c0_i32_0 = arith.constant 0 : i32
    %c0_i32_1 = arith.constant 0 : i32
    return %c0_i32, %c0_i32_0 : i32, i32
  }
  func.func @transform_6(%arg0: i32) -> (i32, i32) {
    %c0_i32 = arith.constant 0 : i32
    %c0_i32_0 = arith.constant 0 : i32
    %c0_i32_1 = arith.constant 0 : i32
    return %c0_i32, %c0_i32_0 : i32, i32
  }
  func.func @transform_7(%arg0: i32) -> (i32, i32) {
    %c0_i32 = arith.constant 0 : i32
    %c0_i32_0 = arith.constant 0 : i32
    %c0_i32_1 = arith.constant 0 : i32
    return %c0_i32, %c0_i32_0 : i32, i32
  }
  func.func @transform_8(%arg0: i32) -> (i32, i32) {
    %c0_i32 = arith.constant 0 : i32
    %c0_i32_0 = arith.constant 0 : i32
    %c0_i32_1 = arith.constant 0 : i32
    return %c0_i32, %c0_i32_0 : i32, i32
  }
  func.func @transform_9(%arg0: i32) -> (i32, i32, i32, i32) {
    %c0_i32 = arith.constant 0 : i32
    %c0_i32_0 = arith.constant 0 : i32
    %c0_i32_1 = arith.constant 0 : i32
    %c0_i32_2 = arith.constant 0 : i32
    return %arg0, %c0_i32, %c0_i32_0, %c0_i32_1 : i32, i32, i32, i32
  }
}

</mosaic_0001>

<llo_original>
// kernel: tpu_custom_call.1
$region0: #{tpu_custom_call.1}
  #allocation0 [shape = 'u32[]', space=smem, size = 0x4, offset = 0x4, fixed_abs, tag = 'smem constant byte address 0x4 - core index']
  #allocation1 [shape = 'u32[144,128]{1,0:T(1,128)}', space=vmem, size = 0x12000, scoped, tag = 'internal scratch']
  %s0 = inlined_call_operand.vmem [shape: f32[2,18,18,128], index: 0, kind: input, shape index: {}]
  %s1 = inlined_call_operand.vmem [shape: f32[9,128], index: 1, kind: input, shape index: {}]
  %s2 = inlined_call_operand.vmem [shape: f32[1,128], index: 2, kind: input, shape index: {}]
  %s3 = inlined_call_operand.vmem [shape: bf16[128,128], index: 3, kind: input, shape index: {}]
  %s4 = inlined_call_operand.vmem [shape: f32[1,128], index: 4, kind: input, shape index: {}]
  %s5 = inlined_call_operand.vmem [shape: f32[128,128], index: 5, kind: input, shape index: {}]
  %s6 = inlined_call_operand.vmem [shape: f32[1,128], index: 6, kind: input, shape index: {}]
  %s7 = inlined_call_operand.vmem [shape: f32[128,128], index: 7, kind: input, shape index: {}]
  %s8 = inlined_call_operand.vmem [shape: f32[1,128], index: 8, kind: input, shape index: {}]
  %s9 = inlined_call_operand.hbm [shape: f32[2,16,16,128], index: 9, kind: output, shape index: {}]
  %s10 = sld [smem:[#allocation0]]
  $region69: #{tpu_custom_call.1} parent=0
    _
  %s12 = ssub.s32 1, %s10
  %s13 = scalar_select 0, %s12, %s10
  $region1: #{tpu_custom_call.1} parent=0
    #allocation2 [shape = 'u8[262144]{0}', space=vmem, size = 0x40000, scoped, tag = 'output window, operand 0']
    #allocation3 [shape = 's32[2]{0}', space=sflag, size = 0x8, scoped, tag = 'scoped memory for tpu_custom_call.1']
    %14 = vsyncpa [#allocation3], 0
    %s15 = scalar_lea.sflag [#allocation3], 1
    %16 = vsyncpa %s15, 0
    loop: start=0, step=1, limit=4
    $region2: #{tpu_custom_call.1} parent=1 // loop_pre_header
      _
    $region3: #{tpu_custom_call.1} parent=1 // loop_header
      %s18 = sphi 0, %s22
      %p19 = scmp.ge.s32.totalorder %s18, 4
      %s28 = sphi 0, %s30
      %s31 = sphi 0, %s28
      %s32 = sphi 0, %s31
      %s48 = sphi 0, %s32
      %s52 = sphi 0, %s52
      %s54 = sphi 0, %s52
      %s55 = sphi 0, %s54
      %s69 = sphi 0, %s55
      %s73 = sphi 0, %s73
      %s75 = sphi 0, %s73
      %s76 = sphi 0, %s75
      %s90 = sphi 0, %s76
      %s94 = sphi 0, %s94
      %s96 = sphi 0, %s94
      %s97 = sphi 0, %s96
      %s111 = sphi 0, %s97
      %s115 = sphi 0, %s115
      %s117 = sphi 0, %s115
      %s118 = sphi 0, %s117
      %s132 = sphi 0, %s118
      %s136 = sphi 0, %s136
      %s138 = sphi 0, %s136
      %s139 = sphi 0, %s138
      %s153 = sphi 0, %s139
      %s157 = sphi 0, %s157
      %s159 = sphi 0, %s157
      %s160 = sphi 0, %s159
      %s174 = sphi 0, %s160
      %s178 = sphi 0, %s178
      %s180 = sphi 0, %s178
      %s181 = sphi 0, %s180
      %s195 = sphi 0, %s181
      %s199 = sphi 0, %s199
      %s201 = sphi 0, %s199
      %s202 = sphi 0, %s201
      %s216 = sphi 0, %s202
      %s222 = sphi 0, %s224
      %s225 = sphi 0, %s222
      %s226 = sphi 0, %s225
      %s242 = sphi 0, %s226
    $region4: #{tpu_custom_call.1} parent=1 // loop_header_branch
      %21 = sbr.rel (%p19) target = $region8
    $region5: #{tpu_custom_call.1} parent=1 // loop_body
      %s23 = ssub.s32 %s18, 1
      %s24 = ssub.s32 %s18, 2
      %s25 = sadd.s32 %s18, 1
      %s26 = ssub.s32 %s18, %s25
      %p27 = scmp.eq.s32.totalorder %s26, 0
      %s29 = sadd.s32 %s28, 1
      %s30 = scalar_select %p27, %s28, %s29
      %p33 = pneg %p27
      %p34 = scmp.eq.s32.totalorder %s18, 1
      %p35 = por %p33, %p34
      %p36 = scmp.ne.s32.totalorder %s28, %s31
      %p37 = scmp.eq.s32.totalorder %s18, 0
      %p38 = por %p36, %p37
      %p39 = scmp.ne.s32.totalorder %s28, %s31
      %p40 = scmp.eq.s32.totalorder %s23, 1
      %p41 = por %p39, %p40
      %p42 = scmp.ne.s32.totalorder %s31, %s32
      %p43 = scmp.eq.s32.totalorder %s23, 0
      %p44 = por %p42, %p43
      %p45 = scmp.ne.s32.totalorder %s31, %s32
      %p46 = scmp.eq.s32.totalorder %s24, 1
      %p47 = por %p45, %p46
      %p49 = scmp.ne.s32.totalorder %s32, %s48
      %p50 = scmp.eq.s32.totalorder %s24, 0
      %p51 = por %p49, %p50
      %s53 = sadd.s32 %s52, 1
      %p56 = scmp.eq.s32.totalorder %s18, 1
      %p57 = scmp.ne.s32.totalorder %s52, %s54
      %p58 = scmp.eq.s32.totalorder %s18, 0
      %p59 = por %p57, %p58
      %p60 = scmp.ne.s32.totalorder %s52, %s54
      %p61 = scmp.eq.s32.totalorder %s23, 1
      %p62 = por %p60, %p61
      %p63 = scmp.ne.s32.totalorder %s54, %s55
      %p64 = scmp.eq.s32.totalorder %s23, 0
      %p65 = por %p63, %p64
      %p66 = scmp.ne.s32.totalorder %s54, %s55
      %p67 = scmp.eq.s32.totalorder %s24, 1
      %p68 = por %p66, %p67
      %p70 = scmp.ne.s32.totalorder %s55, %s69
      %p71 = scmp.eq.s32.totalorder %s24, 0
      %p72 = por %p70, %p71
      %s74 = sadd.s32 %s73, 1
      %p77 = scmp.eq.s32.totalorder %s18, 1
      %p78 = scmp.ne.s32.totalorder %s73, %s75
      %p79 = scmp.eq.s32.totalorder %s18, 0
      %p80 = por %p78, %p79
      %p81 = scmp.ne.s32.totalorder %s73, %s75
      %p82 = scmp.eq.s32.totalorder %s23, 1
      %p83 = por %p81, %p82
      %p84 = scmp.ne.s32.totalorder %s75, %s76
      %p85 = scmp.eq.s32.totalorder %s23, 0
      %p86 = por %p84, %p85
      %p87 = scmp.ne.s32.totalorder %s75, %s76
      %p88 = scmp.eq.s32.totalorder %s24, 1
      %p89 = por %p87, %p88
      %p91 = scmp.ne.s32.totalorder %s76, %s90
      %p92 = scmp.eq.s32.totalorder %s24, 0
      %p93 = por %p91, %p92
      %s95 = sadd.s32 %s94, 1
      %p98 = scmp.eq.s32.totalorder %s18, 1
      %p99 = scmp.ne.s32.totalorder %s94, %s96
      %p100 = scmp.eq.s32.totalorder %s18, 0
      %p101 = por %p99, %p100
      %p102 = scmp.ne.s32.totalorder %s94, %s96
      %p103 = scmp.eq.s32.totalorder %s23, 1
      %p104 = por %p102, %p103
      %p105 = scmp.ne.s32.totalorder %s96, %s97
      %p106 = scmp.eq.s32.totalorder %s23, 0
      %p107 = por %p105, %p106
      %p108 = scmp.ne.s32.totalorder %s96, %s97
      %p109 = scmp.eq.s32.totalorder %s24, 1
      %p110 = por %p108, %p109
      %p112 = scmp.ne.s32.totalorder %s97, %s111
      %p113 = scmp.eq.s32.totalorder %s24, 0
      %p114 = por %p112, %p113
      %s116 = sadd.s32 %s115, 1
      %p119 = scmp.eq.s32.totalorder %s18, 1
      %p120 = scmp.ne.s32.totalorder %s115, %s117
      %p121 = scmp.eq.s32.totalorder %s18, 0
      %p122 = por %p120, %p121
      %p123 = scmp.ne.s32.totalorder %s115, %s117
      %p124 = scmp.eq.s32.totalorder %s23, 1
      %p125 = por %p123, %p124
      %p126 = scmp.ne.s32.totalorder %s117, %s118
      %p127 = scmp.eq.s32.totalorder %s23, 0
      %p128 = por %p126, %p127
      %p129 = scmp.ne.s32.totalorder %s117, %s118
      %p130 = scmp.eq.s32.totalorder %s24, 1
      %p131 = por %p129, %p130
      %p133 = scmp.ne.s32.totalorder %s118, %s132
      %p134 = scmp.eq.s32.totalorder %s24, 0
      %p135 = por %p133, %p134
      %s137 = sadd.s32 %s136, 1
      %p140 = scmp.eq.s32.totalorder %s18, 1
      %p141 = scmp.ne.s32.totalorder %s136, %s138
      %p142 = scmp.eq.s32.totalorder %s18, 0
      %p143 = por %p141, %p142
      %p144 = scmp.ne.s32.totalorder %s136, %s138
      %p145 = scmp.eq.s32.totalorder %s23, 1
      %p146 = por %p144, %p145
      %p147 = scmp.ne.s32.totalorder %s138, %s139
      %p148 = scmp.eq.s32.totalorder %s23, 0
      %p149 = por %p147, %p148
      %p150 = scmp.ne.s32.totalorder %s138, %s139
      %p151 = scmp.eq.s32.totalorder %s24, 1
      %p152 = por %p150, %p151
      %p154 = scmp.ne.s32.totalorder %s139, %s153
      %p155 = scmp.eq.s32.totalorder %s24, 0
      %p156 = por %p154, %p155
      %s158 = sadd.s32 %s157, 1
      %p161 = scmp.eq.s32.totalorder %s18, 1
      %p162 = scmp.ne.s32.totalorder %s157, %s159
      %p163 = scmp.eq.s32.totalorder %s18, 0
      %p164 = por %p162, %p163
      %p165 = scmp.ne.s32.totalorder %s157, %s159
      %p166 = scmp.eq.s32.totalorder %s23, 1
      %p167 = por %p165, %p166
      %p168 = scmp.ne.s32.totalorder %s159, %s160
      %p169 = scmp.eq.s32.totalorder %s23, 0
      %p170 = por %p168, %p169
      %p171 = scmp.ne.s32.totalorder %s159, %s160
      %p172 = scmp.eq.s32.totalorder %s24, 1
      %p173 = por %p171, %p172
      %p175 = scmp.ne.s32.totalorder %s160, %s174
      %p176 = scmp.eq.s32.totalorder %s24, 0
      %p177 = por %p175, %p176
      %s179 = sadd.s32 %s178, 1
      %p182 = scmp.eq.s32.totalorder %s18, 1
      %p183 = scmp.ne.s32.totalorder %s178, %s180
      %p184 = scmp.eq.s32.totalorder %s18, 0
      %p185 = por %p183, %p184
      %p186 = scmp.ne.s32.totalorder %s178, %s180
      %p187 = scmp.eq.s32.totalorder %s23, 1
      %p188 = por %p186, %p187
      %p189 = scmp.ne.s32.totalorder %s180, %s181
      %p190 = scmp.eq.s32.totalorder %s23, 0
      %p191 = por %p189, %p190
      %p192 = scmp.ne.s32.totalorder %s180, %s181
      %p193 = scmp.eq.s32.totalorder %s24, 1
      %p194 = por %p192, %p193
      %p196 = scmp.ne.s32.totalorder %s181, %s195
      %p197 = scmp.eq.s32.totalorder %s24, 0
      %p198 = por %p196, %p197
      %s200 = sadd.s32 %s199, 1
      %p203 = scmp.eq.s32.totalorder %s18, 1
      %p204 = scmp.ne.s32.totalorder %s199, %s201
      %p205 = scmp.eq.s32.totalorder %s18, 0
      %p206 = por %p204, %p205
      %p207 = scmp.ne.s32.totalorder %s199, %s201
      %p208 = scmp.eq.s32.totalorder %s23, 1
      %p209 = por %p207, %p208
      %p210 = scmp.ne.s32.totalorder %s201, %s202
      %p211 = scmp.eq.s32.totalorder %s23, 0
      %p212 = por %p210, %p211
      %p213 = scmp.ne.s32.totalorder %s201, %s202
      %p214 = scmp.eq.s32.totalorder %s24, 1
      %p215 = por %p213, %p214
      %p217 = scmp.ne.s32.totalorder %s202, %s216
      %p218 = scmp.eq.s32.totalorder %s24, 0
      %p219 = por %p217, %p218
      %s220 = ssub.s32 %s18, %s25
      %p221 = scmp.eq.s32.totalorder %s220, 0
      %s223 = sadd.s32 %s222, 1
      %s224 = scalar_select %p221, %s222, %s223
      %p227 = pneg %p221
      %p228 = scmp.eq.s32.totalorder %s18, 1
      %p229 = por %p227, %p228
      %p230 = scmp.ne.s32.totalorder %s222, %s225
      %p231 = scmp.eq.s32.totalorder %s18, 0
      %p232 = por %p230, %p231
      %p233 = scmp.ne.s32.totalorder %s222, %s225
      %p234 = scmp.eq.s32.totalorder %s23, 1
      %p235 = por %p233, %p234
      %p236 = scmp.ne.s32.totalorder %s225, %s226
      %p237 = scmp.eq.s32.totalorder %s23, 0
      %p238 = por %p236, %p237
      %p239 = scmp.ne.s32.totalorder %s225, %s226
      %p240 = scmp.eq.s32.totalorder %s24, 1
      %p241 = por %p239, %p240
      %p243 = scmp.ne.s32.totalorder %s226, %s242
      %p244 = scmp.eq.s32.totalorder %s24, 0
      %p245 = por %p243, %p244
      %p246 = scmp.le.s32.totalorder 1, %s18
      %p247 = scmp.lt.s32.totalorder %s18, 3
      %p248 = pnand %p246, %p247
      %p249 = pneg %p248
      // Predicated region
      $region9: #{tpu_custom_call.1} parent=5 // pred_check
        _
      $region10: #{tpu_custom_call.1} parent=5 // pred_check_branch
        %251 = sbr.rel (%p248) target = $region12
      $region11: #{tpu_custom_call.1} parent=5 // pred_region
        %s252 = ssub.s32 %s18, 1
        // Predicated region
        $region13: #{tpu_custom_call.1} parent=11 // pred_check
          %p253 = pneg %p65
        $region14: #{tpu_custom_call.1} parent=11 // pred_check_branch
          %255 = sbr.rel (%p253) target = $region16
        $region15: #{tpu_custom_call.1} parent=11 // pred_region
          _
        $region16: #{tpu_custom_call.1} parent=11 // pred_fallthru
          _
        // Predicated region
        $region17: #{tpu_custom_call.1} parent=11 // pred_check
          %p256 = pneg %p86
        $region18: #{tpu_custom_call.1} parent=11 // pred_check_branch
          %258 = sbr.rel (%p256) target = $region20
        $region19: #{tpu_custom_call.1} parent=11 // pred_region
          _
        $region20: #{tpu_custom_call.1} parent=11 // pred_fallthru
          _
        // Predicated region
        $region21: #{tpu_custom_call.1} parent=11 // pred_check
          %p259 = pneg %p107
        $region22: #{tpu_custom_call.1} parent=11 // pred_check_branch
          %261 = sbr.rel (%p259) target = $region24
        $region23: #{tpu_custom_call.1} parent=11 // pred_region
          _
        $region24: #{tpu_custom_call.1} parent=11 // pred_fallthru
          _
        // Predicated region
        $region25: #{tpu_custom_call.1} parent=11 // pred_check
          %p262 = pneg %p128
        $region26: #{tpu_custom_call.1} parent=11 // pred_check_branch
          %264 = sbr.rel (%p262) target = $region28
        $region27: #{tpu_custom_call.1} parent=11 // pred_region
          _
        $region28: #{tpu_custom_call.1} parent=11 // pred_fallthru
          _
        // Predicated region
        $region29: #{tpu_custom_call.1} parent=11 // pred_check
          %p265 = pneg %p149
        $region30: #{tpu_custom_call.1} parent=11 // pred_check_branch
          %267 = sbr.rel (%p265) target = $region32
        $region31: #{tpu_custom_call.1} parent=11 // pred_region
          _
        $region32: #{tpu_custom_call.1} parent=11 // pred_fallthru
          _
        // Predicated region
        $region33: #{tpu_custom_call.1} parent=11 // pred_check
          %p268 = pneg %p170
        $region34: #{tpu_custom_call.1} parent=11 // pred_check_branch
          %270 = sbr.rel (%p268) target = $region36
        $region35: #{tpu_custom_call.1} parent=11 // pred_region
          _
        $region36: #{tpu_custom_call.1} parent=11 // pred_fallthru
          _
        // Predicated region
        $region37: #{tpu_custom_call.1} parent=11 // pred_check
          %p271 = pneg %p191
        $region38: #{tpu_custom_call.1} parent=11 // pred_check_branch
          %273 = sbr.rel (%p271) target = $region40
        $region39: #{tpu_custom_call.1} parent=11 // pred_region
          _
        $region40: #{tpu_custom_call.1} parent=11 // pred_fallthru
          _
        // Predicated region
        $region41: #{tpu_custom_call.1} parent=11 // pred_check
          %p274 = pneg %p212
        $region42: #{tpu_custom_call.1} parent=11 // pred_check_branch
          %276 = sbr.rel (%p274) target = $region44
        $region43: #{tpu_custom_call.1} parent=11 // pred_region
          _
        $region44: #{tpu_custom_call.1} parent=11 // pred_fallthru
          _
      $region12: #{tpu_custom_call.1} parent=5 // pred_fallthru
        _
      %p277 = scmp.lt.s32.totalorder %s18, 2
      // Predicated region
      $region45: #{tpu_custom_call.1} parent=5 // pred_check
        %p278 = pneg %p277
      $region46: #{tpu_custom_call.1} parent=5 // pred_check_branch
        %280 = sbr.rel (%p278) target = $region48
      $region47: #{tpu_custom_call.1} parent=5 // pred_region
        // Predicated region
        $region49: #{tpu_custom_call.1} parent=47 // pred_check
          %p281 = pneg %p38
        $region50: #{tpu_custom_call.1} parent=47 // pred_check_branch
          %283 = sbr.rel (%p281) target = $region52
        $region51: #{tpu_custom_call.1} parent=47 // pred_region
          %p284 = scmp.lt.s32.totalorder %s18, 1
          %s285 = scalar_select %p284, %s18, 1
          %s286 = smul.addr %s285, 54
          %s287 = smul.addr %s286, 8
          %s288 = scalar_lea.vmem %s0, %s287
        $region52: #{tpu_custom_call.1} parent=47 // pred_fallthru
          _
      $region48: #{tpu_custom_call.1} parent=5 // pred_fallthru
        _
      %p289 = scmp.le.s32.totalorder 1, %s18
      %p290 = scmp.lt.s32.totalorder %s18, 3
      %p291 = pnand %p289, %p290
      %p292 = pneg %p291
      // Predicated region
      $region53: #{tpu_custom_call.1} parent=5 // pred_check
        _
      $region54: #{tpu_custom_call.1} parent=5 // pred_check_branch
        %294 = sbr.rel (%p291) target = $region56
      $region55: #{tpu_custom_call.1} parent=5 // pred_region
        %s295 = ssub.s32 %s18, 1
        %p296 = scmp.lt.s32.totalorder %s23, 1
        %s297 = scalar_select %p296, %s23, 1
        %s298 = smul.addr %s297, 54
        %s299 = smul.addr %s298, 8
        %s300 = scalar_lea.vmem %s0, %s299
        %p301 = pneg %p44
        %p302 = pneg %p41
        %p303 = pneg %p65
        %p304 = pneg %p62
        %p305 = pneg %p86
        %p306 = pneg %p83
        %p307 = pneg %p107
        %p308 = pneg %p104
        %p309 = pneg %p128
        %p310 = pneg %p125
        %p311 = pneg %p149
        %p312 = pneg %p146
        %p313 = pneg %p170
        %p314 = pneg %p167
        %p315 = pneg %p191
        %p316 = pneg %p188
        %p317 = pneg %p212
        %p318 = pneg %p209
        %p319 = pneg %p238
        %p320 = pneg %p235
        %s321 = sand.u32 %s225, 1
        %s322 = scalar_lea.sflag [#allocation3], %s321
        %s323 = sand.u32 %s225, 1
        %s324 = smul.addr %s323, 256
        %s325 = scalar_lea.vmem [#allocation2], %s324
        %p326 = scmp.lt.s32.totalorder %s23, 1
        %s327 = scalar_select %p326, %s23, 1
        %s328 = smul.addr %s327, 54
        %s329 = smul.addr %s328, 8
        %s330 = scalar_lea.vmem %s0, %s329
        %v332 = vld [vmem:[%s1] sm:$0xff]
        %v333 = vld [vmem:[%s1 + $0x8] sm:$0x1]
        %v334 = vld [vmem:[%s2] sm:$0x1]
        %v335 = vld [vmem:[%s330] sm:$0xff]
        %v336 = vld [vmem:[%s330 + $0x8] sm:$0xff]
        %v337 = vld [vmem:[%s330 + $0x10] sm:$0x3]
        %v338 = vld [vmem:[%s330 + $0x18] sm:$0xff]
        %v339 = vld [vmem:[%s330 + $0x20] sm:$0xff]
        %v340 = vld [vmem:[%s330 + $0x28] sm:$0x3]
        %v341 = vld [vmem:[%s330 + $0x30] sm:$0xff]
        %v342 = vld [vmem:[%s330 + $0x38] sm:$0xff]
        %v343 = vld [vmem:[%s330 + $0x40] sm:$0x3]
        %v344 = vld [vmem:[%s330 + $0x48] sm:$0xff]
        %v345 = vld [vmem:[%s330 + $0x50] sm:$0xff]
        %v346 = vld [vmem:[%s330 + $0x58] sm:$0x3]
        %v347 = vld [vmem:[%s330 + $0x60] sm:$0xff]
        %v348 = vld [vmem:[%s330 + $0x68] sm:$0xff]
        %v349 = vld [vmem:[%s330 + $0x70] sm:$0x3]
        %v350 = vld [vmem:[%s330 + $0x78] sm:$0xff]
        %v351 = vld [vmem:[%s330 + $0x80] sm:$0xff]
        %v352 = vld [vmem:[%s330 + $0x88] sm:$0x3]
        %v353 = vld [vmem:[%s330 + $0x90] sm:$0xff]
        %v354 = vld [vmem:[%s330 + $0x98] sm:$0xff]
        %v355 = vld [vmem:[%s330 + $0xa0] sm:$0x3]
        %v356 = vld [vmem:[%s330 + $0xa8] sm:$0xff]
        %v357 = vld [vmem:[%s330 + $0xb0] sm:$0xff]
        %v358 = vld [vmem:[%s330 + $0xb8] sm:$0x3]
        %v359 = vld [vmem:[%s330 + $0xc0] sm:$0xff]
        %v360 = vld [vmem:[%s330 + $0xc8] sm:$0xff]
        %v361 = vld [vmem:[%s330 + $0xd0] sm:$0x3]
        %v362 = vld [vmem:[%s330 + $0xd8] sm:$0xff]
        %v363 = vld [vmem:[%s330 + $0xe0] sm:$0xff]
        %v364 = vld [vmem:[%s330 + $0xe8] sm:$0x3]
        %v365 = vld [vmem:[%s330 + $0xf0] sm:$0xff]
        %v366 = vld [vmem:[%s330 + $0xf8] sm:$0xff]
        %v367 = vld [vmem:[%s330 + $0x100] sm:$0x3]
        %v368 = vld [vmem:[%s330 + $0x108] sm:$0xff]
        %v369 = vld [vmem:[%s330 + $0x110] sm:$0xff]
        %v370 = vld [vmem:[%s330 + $0x118] sm:$0x3]
        %v371 = vld [vmem:[%s330 + $0x120] sm:$0xff]
        %v372 = vld [vmem:[%s330 + $0x128] sm:$0xff]
        %v373 = vld [vmem:[%s330 + $0x130] sm:$0x3]
        %v374 = vld [vmem:[%s330 + $0x138] sm:$0xff]
        %v375 = vld [vmem:[%s330 + $0x140] sm:$0xff]
        %v376 = vld [vmem:[%s330 + $0x148] sm:$0x3]
        %v377 = vld [vmem:[%s330 + $0x150] sm:$0xff]
        %v378 = vld [vmem:[%s330 + $0x158] sm:$0xff]
        %v379 = vld [vmem:[%s330 + $0x160] sm:$0x3]
        %v380 = vld [vmem:[%s330 + $0x168] sm:$0xff]
        %v381 = vld [vmem:[%s330 + $0x170] sm:$0xff]
        %v382 = vld [vmem:[%s330 + $0x178] sm:$0x3]
        %v383 = vlaneseq
        %v384 = vshrl.u32 %v383, 7
        %v385 = vsub.s32 0, %v384
        %v386 = vrot.slane %v332, %v385
        %v387 = vmul.f32 %v335, %v386
        %v388 = vmul.f32 %v336, %v386
        %v389 = vmul.f32 %v338, %v386
        %v390 = vmul.f32 %v339, %v386
        %v391 = vmul.f32 %v341, %v386
        %v392 = vmul.f32 %v342, %v386
        %v393 = vmul.f32 %v344, %v386
        %v394 = vmul.f32 %v345, %v386
        %v395 = vmul.f32 %v347, %v386
        %v396 = vmul.f32 %v348, %v386
        %v397 = vmul.f32 %v350, %v386
        %v398 = vmul.f32 %v351, %v386
        %v399 = vmul.f32 %v353, %v386
        %v400 = vmul.f32 %v354, %v386
        %v401 = vmul.f32 %v356, %v386
        %v402 = vmul.f32 %v357, %v386
        %v403 = vmul.f32 %v359, %v386
        %v404 = vmul.f32 %v360, %v386
        %v405 = vmul.f32 %v362, %v386
        %v406 = vmul.f32 %v363, %v386
        %v407 = vmul.f32 %v365, %v386
        %v408 = vmul.f32 %v366, %v386
        %v409 = vmul.f32 %v368, %v386
        %v410 = vmul.f32 %v369, %v386
        %v411 = vmul.f32 %v371, %v386
        %v412 = vmul.f32 %v372, %v386
        %v413 = vmul.f32 %v374, %v386
        %v414 = vmul.f32 %v375, %v386
        %v415 = vmul.f32 %v377, %v386
        %v416 = vmul.f32 %v378, %v386
        %v417 = vmul.f32 %v380, %v386
        %v418 = vmul.f32 %v381, %v386
        %v420 = vlaneseq
        %v421 = vshrl.u32 %v420, 7
        %v422 = vsub.s32 0, %v421
        %v423 = vrot.slane %v334, %v422
        %v425 = vadd.f32 %v387, %v423
        %v426 = vadd.f32 %v388, %v423
        %v427 = vadd.f32 %v389, %v423
        %v428 = vadd.f32 %v390, %v423
        %v429 = vadd.f32 %v391, %v423
        %v430 = vadd.f32 %v392, %v423
        %v431 = vadd.f32 %v393, %v423
        %v432 = vadd.f32 %v394, %v423
        %v433 = vadd.f32 %v395, %v423
        %v434 = vadd.f32 %v396, %v423
        %v435 = vadd.f32 %v397, %v423
        %v436 = vadd.f32 %v398, %v423
        %v437 = vadd.f32 %v399, %v423
        %v438 = vadd.f32 %v400, %v423
        %v439 = vadd.f32 %v401, %v423
        %v440 = vadd.f32 %v402, %v423
        %v441 = vadd.f32 %v403, %v423
        %v442 = vadd.f32 %v404, %v423
        %v443 = vadd.f32 %v405, %v423
        %v444 = vadd.f32 %v406, %v423
        %v445 = vadd.f32 %v407, %v423
        %v446 = vadd.f32 %v408, %v423
        %v447 = vadd.f32 %v409, %v423
        %v448 = vadd.f32 %v410, %v423
        %v449 = vadd.f32 %v411, %v423
        %v450 = vadd.f32 %v412, %v423
        %v451 = vadd.f32 %v413, %v423
        %v452 = vadd.f32 %v414, %v423
        %v453 = vadd.f32 %v415, %v423
        %v454 = vadd.f32 %v416, %v423
        %v455 = vadd.f32 %v417, %v423
        %v456 = vadd.f32 %v418, %v423
        %v457 = vlaneseq
        %v458 = vshrl.u32 %v457, 7
        %v459 = vsub.s32 1, %v458
        %v460 = vrot.slane %v332, %v459
        %v461 = vmul.f32 %v335, %v460
        %v462 = vmul.f32 %v336, %v460
        %v463 = vmul.f32 %v337, %v460
        %v464 = vmul.f32 %v338, %v460
        %v465 = vmul.f32 %v339, %v460
        %v466 = vmul.f32 %v340, %v460
        %v467 = vmul.f32 %v341, %v460
        %v468 = vmul.f32 %v342, %v460
        %v469 = vmul.f32 %v343, %v460
        %v470 = vmul.f32 %v344, %v460
        %v471 = vmul.f32 %v345, %v460
        %v472 = vmul.f32 %v346, %v460
        %v473 = vmul.f32 %v347, %v460
        %v474 = vmul.f32 %v348, %v460
        %v475 = vmul.f32 %v349, %v460
        %v476 = vmul.f32 %v350, %v460
        %v477 = vmul.f32 %v351, %v460
        %v478 = vmul.f32 %v352, %v460
        %v479 = vmul.f32 %v353, %v460
        %v480 = vmul.f32 %v354, %v460
        %v481 = vmul.f32 %v355, %v460
        %v482 = vmul.f32 %v356, %v460
        %v483 = vmul.f32 %v357, %v460
        %v484 = vmul.f32 %v358, %v460
        %v485 = vmul.f32 %v359, %v460
        %v486 = vmul.f32 %v360, %v460
        %v487 = vmul.f32 %v361, %v460
        %v488 = vmul.f32 %v362, %v460
        %v489 = vmul.f32 %v363, %v460
        %v490 = vmul.f32 %v364, %v460
        %v491 = vmul.f32 %v365, %v460
        %v492 = vmul.f32 %v366, %v460
        %v493 = vmul.f32 %v367, %v460
        %v494 = vmul.f32 %v368, %v460
        %v495 = vmul.f32 %v369, %v460
        %v496 = vmul.f32 %v370, %v460
        %v497 = vmul.f32 %v371, %v460
        %v498 = vmul.f32 %v372, %v460
        %v499 = vmul.f32 %v373, %v460
        %v500 = vmul.f32 %v374, %v460
        %v501 = vmul.f32 %v375, %v460
        %v502 = vmul.f32 %v376, %v460
        %v503 = vmul.f32 %v377, %v460
        %v504 = vmul.f32 %v378, %v460
        %v505 = vmul.f32 %v379, %v460
        %v506 = vmul.f32 %v380, %v460
        %v507 = vmul.f32 %v381, %v460
        %v508 = vmul.f32 %v382, %v460
        %vm557 = vcmask 1046528
        %v558 = vrot.slane %v461, 1
        %v559 = vrot.slane %v462, 1
        %v560 = vsel %vm557, %v558, %v559
        %v561 = vrot.slane %v463, 1
        %v562 = vsel %vm557, %v559, %v561
        %v563 = vrot.slane %v464, 1
        %v564 = vrot.slane %v465, 1
        %v565 = vsel %vm557, %v563, %v564
        %v566 = vrot.slane %v466, 1
        %v567 = vsel %vm557, %v564, %v566
        %v568 = vrot.slane %v467, 1
        %v569 = vrot.slane %v468, 1
        %v570 = vsel %vm557, %v568, %v569
        %v571 = vrot.slane %v469, 1
        %v572 = vsel %vm557, %v569, %v571
        %v573 = vrot.slane %v470, 1
        %v574 = vrot.slane %v471, 1
        %v575 = vsel %vm557, %v573, %v574
        %v576 = vrot.slane %v472, 1
        %v577 = vsel %vm557, %v574, %v576
        %v578 = vrot.slane %v473, 1
        %v579 = vrot.slane %v474, 1
        %v580 = vsel %vm557, %v578, %v579
        %v581 = vrot.slane %v475, 1
        %v582 = vsel %vm557, %v579, %v581
        %v583 = vrot.slane %v476, 1
        %v584 = vrot.slane %v477, 1
        %v585 = vsel %vm557, %v583, %v584
        %v586 = vrot.slane %v478, 1
        %v587 = vsel %vm557, %v584, %v586
        %v588 = vrot.slane %v479, 1
        %v589 = vrot.slane %v480, 1
        %v590 = vsel %vm557, %v588, %v589
        %v591 = vrot.slane %v481, 1
        %v592 = vsel %vm557, %v589, %v591
        %v593 = vrot.slane %v482, 1
        %v594 = vrot.slane %v483, 1
        %v595 = vsel %vm557, %v593, %v594
        %v596 = vrot.slane %v484, 1
        %v597 = vsel %vm557, %v594, %v596
        %v598 = vrot.slane %v485, 1
        %v599 = vrot.slane %v486, 1
        %v600 = vsel %vm557, %v598, %v599
        %v601 = vrot.slane %v487, 1
        %v602 = vsel %vm557, %v599, %v601
        %v603 = vrot.slane %v488, 1
        %v604 = vrot.slane %v489, 1
        %v605 = vsel %vm557, %v603, %v604
        %v606 = vrot.slane %v490, 1
        %v607 = vsel %vm557, %v604, %v606
        %v608 = vrot.slane %v491, 1
        %v609 = vrot.slane %v492, 1
        %v610 = vsel %vm557, %v608, %v609
        %v611 = vrot.slane %v493, 1
        %v612 = vsel %vm557, %v609, %v611
        %v613 = vrot.slane %v494, 1
        %v614 = vrot.slane %v495, 1
        %v615 = vsel %vm557, %v613, %v614
        %v616 = vrot.slane %v496, 1
        %v617 = vsel %vm557, %v614, %v616
        %v618 = vrot.slane %v497, 1
        %v619 = vrot.slane %v498, 1
        %v620 = vsel %vm557, %v618, %v619
        %v621 = vrot.slane %v499, 1
        %v622 = vsel %vm557, %v619, %v621
        %v623 = vrot.slane %v500, 1
        %v624 = vrot.slane %v501, 1
        %v625 = vsel %vm557, %v623, %v624
        %v626 = vrot.slane %v502, 1
        %v627 = vsel %vm557, %v624, %v626
        %v628 = vrot.slane %v503, 1
        %v629 = vrot.slane %v504, 1
        %v630 = vsel %vm557, %v628, %v629
        %v631 = vrot.slane %v505, 1
        %v632 = vsel %vm557, %v629, %v631
        %v633 = vrot.slane %v506, 1
        %v634 = vrot.slane %v507, 1
        %v635 = vsel %vm557, %v633, %v634
        %v636 = vrot.slane %v508, 1
        %v637 = vsel %vm557, %v634, %v636
        %v670 = vadd.f32 %v425, %v560
        %v671 = vadd.f32 %v426, %v562
        %v672 = vadd.f32 %v427, %v565
        %v673 = vadd.f32 %v428, %v567
        %v674 = vadd.f32 %v429, %v570
        %v675 = vadd.f32 %v430, %v572
        %v676 = vadd.f32 %v431, %v575
        %v677 = vadd.f32 %v432, %v577
        %v678 = vadd.f32 %v433, %v580
        %v679 = vadd.f32 %v434, %v582
        %v680 = vadd.f32 %v435, %v585
        %v681 = vadd.f32 %v436, %v587
        %v682 = vadd.f32 %v437, %v590
        %v683 = vadd.f32 %v438, %v592
        %v684 = vadd.f32 %v439, %v595
        %v685 = vadd.f32 %v440, %v597
        %v686 = vadd.f32 %v441, %v600
        %v687 = vadd.f32 %v442, %v602
        %v688 = vadd.f32 %v443, %v605
        %v689 = vadd.f32 %v444, %v607
        %v690 = vadd.f32 %v445, %v610
        %v691 = vadd.f32 %v446, %v612
        %v692 = vadd.f32 %v447, %v615
        %v693 = vadd.f32 %v448, %v617
        %v694 = vadd.f32 %v449, %v620
        %v695 = vadd.f32 %v450, %v622
        %v696 = vadd.f32 %v451, %v625
        %v697 = vadd.f32 %v452, %v627
        %v698 = vadd.f32 %v453, %v630
        %v699 = vadd.f32 %v454, %v632
        %v700 = vadd.f32 %v455, %v635
        %v701 = vadd.f32 %v456, %v637
        %v702 = vlaneseq
        %v703 = vshrl.u32 %v702, 7
        %v704 = vsub.s32 2, %v703
        %v705 = vrot.slane %v332, %v704
        %v706 = vmul.f32 %v335, %v705
        %v707 = vmul.f32 %v336, %v705
        %v708 = vmul.f32 %v337, %v705
        %v709 = vmul.f32 %v338, %v705
        %v710 = vmul.f32 %v339, %v705
        %v711 = vmul.f32 %v340, %v705
        %v712 = vmul.f32 %v341, %v705
        %v713 = vmul.f32 %v342, %v705
        %v714 = vmul.f32 %v343, %v705
        %v715 = vmul.f32 %v344, %v705
        %v716 = vmul.f32 %v345, %v705
        %v717 = vmul.f32 %v346, %v705
        %v718 = vmul.f32 %v347, %v705
        %v719 = vmul.f32 %v348, %v705
        %v720 = vmul.f32 %v349, %v705
        %v721 = vmul.f32 %v350, %v705
        %v722 = vmul.f32 %v351, %v705
        %v723 = vmul.f32 %v352, %v705
        %v724 = vmul.f32 %v353, %v705
        %v725 = vmul.f32 %v354, %v705
        %v726 = vmul.f32 %v355, %v705
        %v727 = vmul.f32 %v356, %v705
        %v728 = vmul.f32 %v357, %v705
        %v729 = vmul.f32 %v358, %v705
        %v730 = vmul.f32 %v359, %v705
        %v731 = vmul.f32 %v360, %v705
        %v732 = vmul.f32 %v361, %v705
        %v733 = vmul.f32 %v362, %v705
        %v734 = vmul.f32 %v363, %v705
        %v735 = vmul.f32 %v364, %v705
        %v736 = vmul.f32 %v365, %v705
        %v737 = vmul.f32 %v366, %v705
        %v738 = vmul.f32 %v367, %v705
        %v739 = vmul.f32 %v368, %v705
        %v740 = vmul.f32 %v369, %v705
        %v741 = vmul.f32 %v370, %v705
        %v742 = vmul.f32 %v371, %v705
        %v743 = vmul.f32 %v372, %v705
        %v744 = vmul.f32 %v373, %v705
        %v745 = vmul.f32 %v374, %v705
        %v746 = vmul.f32 %v375, %v705
        %v747 = vmul.f32 %v376, %v705
        %v748 = vmul.f32 %v377, %v705
        %v749 = vmul.f32 %v378, %v705
        %v750 = vmul.f32 %v379, %v705
        %v751 = vmul.f32 %v380, %v705
        %v752 = vmul.f32 %v381, %v705
        %v753 = vmul.f32 %v382, %v705
        %vm802 = vcmask 1045504
        %v803 = vrot.slane %v706, 2
        %v804 = vrot.slane %v707, 2
        %v805 = vsel %vm802, %v803, %v804
        %v806 = vrot.slane %v708, 2
        %v807 = vsel %vm802, %v804, %v806
        %v808 = vrot.slane %v709, 2
        %v809 = vrot.slane %v710, 2
        %v810 = vsel %vm802, %v808, %v809
        %v811 = vrot.slane %v711, 2
        %v812 = vsel %vm802, %v809, %v811
        %v813 = vrot.slane %v712, 2
        %v814 = vrot.slane %v713, 2
        %v815 = vsel %vm802, %v813, %v814
        %v816 = vrot.slane %v714, 2
        %v817 = vsel %vm802, %v814, %v816
        %v818 = vrot.slane %v715, 2
        %v819 = vrot.slane %v716, 2
        %v820 = vsel %vm802, %v818, %v819
        %v821 = vrot.slane %v717, 2
        %v822 = vsel %vm802, %v819, %v821
        %v823 = vrot.slane %v718, 2
        %v824 = vrot.slane %v719, 2
        %v825 = vsel %vm802, %v823, %v824
        %v826 = vrot.slane %v720, 2
        %v827 = vsel %vm802, %v824, %v826
        %v828 = vrot.slane %v721, 2
        %v829 = vrot.slane %v722, 2
        %v830 = vsel %vm802, %v828, %v829
        %v831 = vrot.slane %v723, 2
        %v832 = vsel %vm802, %v829, %v831
        %v833 = vrot.slane %v724, 2
        %v834 = vrot.slane %v725, 2
        %v835 = vsel %vm802, %v833, %v834
        %v836 = vrot.slane %v726, 2
        %v837 = vsel %vm802, %v834, %v836
        %v838 = vrot.slane %v727, 2
        %v839 = vrot.slane %v728, 2
        %v840 = vsel %vm802, %v838, %v839
        %v841 = vrot.slane %v729, 2
        %v842 = vsel %vm802, %v839, %v841
        %v843 = vrot.slane %v730, 2
        %v844 = vrot.slane %v731, 2
        %v845 = vsel %vm802, %v843, %v844
        %v846 = vrot.slane %v732, 2
        %v847 = vsel %vm802, %v844, %v846
        %v848 = vrot.slane %v733, 2
        %v849 = vrot.slane %v734, 2
        %v850 = vsel %vm802, %v848, %v849
        %v851 = vrot.slane %v735, 2
        %v852 = vsel %vm802, %v849, %v851
        %v853 = vrot.slane %v736, 2
        %v854 = vrot.slane %v737, 2
        %v855 = vsel %vm802, %v853, %v854
        %v856 = vrot.slane %v738, 2
        %v857 = vsel %vm802, %v854, %v856
        %v858 = vrot.slane %v739, 2
        %v859 = vrot.slane %v740, 2
        %v860 = vsel %vm802, %v858, %v859
        %v861 = vrot.slane %v741, 2
        %v862 = vsel %vm802, %v859, %v861
        %v863 = vrot.slane %v742, 2
        %v864 = vrot.slane %v743, 2
        %v865 = vsel %vm802, %v863, %v864
        %v866 = vrot.slane %v744, 2
        %v867 = vsel %vm802, %v864, %v866
        %v868 = vrot.slane %v745, 2
        %v869 = vrot.slane %v746, 2
        %v870 = vsel %vm802, %v868, %v869
        %v871 = vrot.slane %v747, 2
        %v872 = vsel %vm802, %v869, %v871
        %v873 = vrot.slane %v748, 2
        %v874 = vrot.slane %v749, 2
        %v875 = vsel %vm802, %v873, %v874
        %v876 = vrot.slane %v750, 2
        %v877 = vsel %vm802, %v874, %v876
        %v878 = vrot.slane %v751, 2
        %v879 = vrot.slane %v752, 2
        %v880 = vsel %vm802, %v878, %v879
        %v881 = vrot.slane %v753, 2
        %v882 = vsel %vm802, %v879, %v881
        %v915 = vadd.f32 %v670, %v805
        %v916 = vadd.f32 %v671, %v807
        %v917 = vadd.f32 %v672, %v810
        %v918 = vadd.f32 %v673, %v812
        %v919 = vadd.f32 %v674, %v815
        %v920 = vadd.f32 %v675, %v817
        %v921 = vadd.f32 %v676, %v820
        %v922 = vadd.f32 %v677, %v822
        %v923 = vadd.f32 %v678, %v825
        %v924 = vadd.f32 %v679, %v827
        %v925 = vadd.f32 %v680, %v830
        %v926 = vadd.f32 %v681, %v832
        %v927 = vadd.f32 %v682, %v835
        %v928 = vadd.f32 %v683, %v837
        %v929 = vadd.f32 %v684, %v840
        %v930 = vadd.f32 %v685, %v842
        %v931 = vadd.f32 %v686, %v845
        %v932 = vadd.f32 %v687, %v847
        %v933 = vadd.f32 %v688, %v850
        %v934 = vadd.f32 %v689, %v852
        %v935 = vadd.f32 %v690, %v855
        %v936 = vadd.f32 %v691, %v857
        %v937 = vadd.f32 %v692, %v860
        %v938 = vadd.f32 %v693, %v862
        %v939 = vadd.f32 %v694, %v865
        %v940 = vadd.f32 %v695, %v867
        %v941 = vadd.f32 %v696, %v870
        %v942 = vadd.f32 %v697, %v872
        %v943 = vadd.f32 %v698, %v875
        %v944 = vadd.f32 %v699, %v877
        %v945 = vadd.f32 %v700, %v880
        %v946 = vadd.f32 %v701, %v882
        %s947 = scalar_lea.vmem %s330, 24
        %v948 = vld [vmem:[%s947] sm:$0xff]
        %v949 = vld [vmem:[%s947 + $0x8] sm:$0xff]
        %v950 = vld [vmem:[%s947 + $0x10] sm:$0x3]
        %v951 = vld [vmem:[%s947 + $0x18] sm:$0xff]
        %v952 = vld [vmem:[%s947 + $0x20] sm:$0xff]
        %v953 = vld [vmem:[%s947 + $0x28] sm:$0x3]
        %v954 = vld [vmem:[%s947 + $0x30] sm:$0xff]
        %v955 = vld [vmem:[%s947 + $0x38] sm:$0xff]
        %v956 = vld [vmem:[%s947 + $0x40] sm:$0x3]
        %v957 = vld [vmem:[%s947 + $0x48] sm:$0xff]
        %v958 = vld [vmem:[%s947 + $0x50] sm:$0xff]
        %v959 = vld [vmem:[%s947 + $0x58] sm:$0x3]
        %v960 = vld [vmem:[%s947 + $0x60] sm:$0xff]
        %v961 = vld [vmem:[%s947 + $0x68] sm:$0xff]
        %v962 = vld [vmem:[%s947 + $0x70] sm:$0x3]
        %v963 = vld [vmem:[%s947 + $0x78] sm:$0xff]
        %v964 = vld [vmem:[%s947 + $0x80] sm:$0xff]
        %v965 = vld [vmem:[%s947 + $0x88] sm:$0x3]
        %v966 = vld [vmem:[%s947 + $0x90] sm:$0xff]
        %v967 = vld [vmem:[%s947 + $0x98] sm:$0xff]
        %v968 = vld [vmem:[%s947 + $0xa0] sm:$0x3]
        %v969 = vld [vmem:[%s947 + $0xa8] sm:$0xff]
        %v970 = vld [vmem:[%s947 + $0xb0] sm:$0xff]
        %v971 = vld [vmem:[%s947 + $0xb8] sm:$0x3]
        %v972 = vld [vmem:[%s947 + $0xc0] sm:$0xff]
        %v973 = vld [vmem:[%s947 + $0xc8] sm:$0xff]
        %v974 = vld [vmem:[%s947 + $0xd0] sm:$0x3]
        %v975 = vld [vmem:[%s947 + $0xd8] sm:$0xff]
        %v976 = vld [vmem:[%s947 + $0xe0] sm:$0xff]
        %v977 = vld [vmem:[%s947 + $0xe8] sm:$0x3]
        %v978 = vld [vmem:[%s947 + $0xf0] sm:$0xff]
        %v979 = vld [vmem:[%s947 + $0xf8] sm:$0xff]
        %v980 = vld [vmem:[%s947 + $0x100] sm:$0x3]
        %v981 = vld [vmem:[%s947 + $0x108] sm:$0xff]
        %v982 = vld [vmem:[%s947 + $0x110] sm:$0xff]
        %v983 = vld [vmem:[%s947 + $0x118] sm:$0x3]
        %v984 = vld [vmem:[%s947 + $0x120] sm:$0xff]
        %v985 = vld [vmem:[%s947 + $0x128] sm:$0xff]
        %v986 = vld [vmem:[%s947 + $0x130] sm:$0x3]
        %v987 = vld [vmem:[%s947 + $0x138] sm:$0xff]
        %v988 = vld [vmem:[%s947 + $0x140] sm:$0xff]
        %v989 = vld [vmem:[%s947 + $0x148] sm:$0x3]
        %v990 = vld [vmem:[%s947 + $0x150] sm:$0xff]
        %v991 = vld [vmem:[%s947 + $0x158] sm:$0xff]
        %v992 = vld [vmem:[%s947 + $0x160] sm:$0x3]
        %v993 = vld [vmem:[%s947 + $0x168] sm:$0xff]
        %v994 = vld [vmem:[%s947 + $0x170] sm:$0xff]
        %v995 = vld [vmem:[%s947 + $0x178] sm:$0x3]
        %v996 = vlaneseq
        %v997 = vshrl.u32 %v996, 7
        %v998 = vsub.s32 3, %v997
        %v999 = vrot.slane %v332, %v998
        %v1000 = vmul.f32 %v948, %v999
        %v1001 = vmul.f32 %v949, %v999
        %v1002 = vmul.f32 %v951, %v999
        %v1003 = vmul.f32 %v952, %v999
        %v1004 = vmul.f32 %v954, %v999
        %v1005 = vmul.f32 %v955, %v999
        %v1006 = vmul.f32 %v957, %v999
        %v1007 = vmul.f32 %v958, %v999
        %v1008 = vmul.f32 %v960, %v999
        %v1009 = vmul.f32 %v961, %v999
        %v1010 = vmul.f32 %v963, %v999
        %v1011 = vmul.f32 %v964, %v999
        %v1012 = vmul.f32 %v966, %v999
        %v1013 = vmul.f32 %v967, %v999
        %v1014 = vmul.f32 %v969, %v999
        %v1015 = vmul.f32 %v970, %v999
        %v1016 = vmul.f32 %v972, %v999
        %v1017 = vmul.f32 %v973, %v999
        %v1018 = vmul.f32 %v975, %v999
        %v1019 = vmul.f32 %v976, %v999
        %v1020 = vmul.f32 %v978, %v999
        %v1021 = vmul.f32 %v979, %v999
        %v1022 = vmul.f32 %v981, %v999
        %v1023 = vmul.f32 %v982, %v999
        %v1024 = vmul.f32 %v984, %v999
        %v1025 = vmul.f32 %v985, %v999
        %v1026 = vmul.f32 %v987, %v999
        %v1027 = vmul.f32 %v988, %v999
        %v1028 = vmul.f32 %v990, %v999
        %v1029 = vmul.f32 %v991, %v999
        %v1030 = vmul.f32 %v993, %v999
        %v1031 = vmul.f32 %v994, %v999
        %v1032 = vadd.f32 %v915, %v1000
        %v1033 = vadd.f32 %v916, %v1001
        %v1034 = vadd.f32 %v917, %v1002
        %v1035 = vadd.f32 %v918, %v1003
        %v1036 = vadd.f32 %v919, %v1004
        %v1037 = vadd.f32 %v920, %v1005
        %v1038 = vadd.f32 %v921, %v1006
        %v1039 = vadd.f32 %v922, %v1007
        %v1040 = vadd.f32 %v923, %v1008
        %v1041 = vadd.f32 %v924, %v1009
        %v1042 = vadd.f32 %v925, %v1010
        %v1043 = vadd.f32 %v926, %v1011
        %v1044 = vadd.f32 %v927, %v1012
        %v1045 = vadd.f32 %v928, %v1013
        %v1046 = vadd.f32 %v929, %v1014
        %v1047 = vadd.f32 %v930, %v1015
        %v1048 = vadd.f32 %v931, %v1016
        %v1049 = vadd.f32 %v932, %v1017
        %v1050 = vadd.f32 %v933, %v1018
        %v1051 = vadd.f32 %v934, %v1019
        %v1052 = vadd.f32 %v935, %v1020
        %v1053 = vadd.f32 %v936, %v1021
        %v1054 = vadd.f32 %v937, %v1022
        %v1055 = vadd.f32 %v938, %v1023
        %v1056 = vadd.f32 %v939, %v1024
        %v1057 = vadd.f32 %v940, %v1025
        %v1058 = vadd.f32 %v941, %v1026
        %v1059 = vadd.f32 %v942, %v1027
        %v1060 = vadd.f32 %v943, %v1028
        %v1061 = vadd.f32 %v944, %v1029
        %v1062 = vadd.f32 %v945, %v1030
        %v1063 = vadd.f32 %v946, %v1031
        %v1064 = vlaneseq
        %v1065 = vshrl.u32 %v1064, 7
        %v1066 = vsub.s32 4, %v1065
        %v1067 = vrot.slane %v332, %v1066
        %v1068 = vmul.f32 %v948, %v1067
        %v1069 = vmul.f32 %v949, %v1067
        %v1070 = vmul.f32 %v950, %v1067
        %v1071 = vmul.f32 %v951, %v1067
        %v1072 = vmul.f32 %v952, %v1067
        %v1073 = vmul.f32 %v953, %v1067
        %v1074 = vmul.f32 %v954, %v1067
        %v1075 = vmul.f32 %v955, %v1067
        %v1076 = vmul.f32 %v956, %v1067
        %v1077 = vmul.f32 %v957, %v1067
        %v1078 = vmul.f32 %v958, %v1067
        %v1079 = vmul.f32 %v959, %v1067
        %v1080 = vmul.f32 %v960, %v1067
        %v1081 = vmul.f32 %v961, %v1067
        %v1082 = vmul.f32 %v962, %v1067
        %v1083 = vmul.f32 %v963, %v1067
        %v1084 = vmul.f32 %v964, %v1067
        %v1085 = vmul.f32 %v965, %v1067
        %v1086 = vmul.f32 %v966, %v1067
        %v1087 = vmul.f32 %v967, %v1067
        %v1088 = vmul.f32 %v968, %v1067
        %v1089 = vmul.f32 %v969, %v1067
        %v1090 = vmul.f32 %v970, %v1067
        %v1091 = vmul.f32 %v971, %v1067
        %v1092 = vmul.f32 %v972, %v1067
        %v1093 = vmul.f32 %v973, %v1067
        %v1094 = vmul.f32 %v974, %v1067
        %v1095 = vmul.f32 %v975, %v1067
        %v1096 = vmul.f32 %v976, %v1067
        %v1097 = vmul.f32 %v977, %v1067
        %v1098 = vmul.f32 %v978, %v1067
        %v1099 = vmul.f32 %v979, %v1067
        %v1100 = vmul.f32 %v980, %v1067
        %v1101 = vmul.f32 %v981, %v1067
        %v1102 = vmul.f32 %v982, %v1067
        %v1103 = vmul.f32 %v983, %v1067
        %v1104 = vmul.f32 %v984, %v1067
        %v1105 = vmul.f32 %v985, %v1067
        %v1106 = vmul.f32 %v986, %v1067
        %v1107 = vmul.f32 %v987, %v1067
        %v1108 = vmul.f32 %v988, %v1067
        %v1109 = vmul.f32 %v989, %v1067
        %v1110 = vmul.f32 %v990, %v1067
        %v1111 = vmul.f32 %v991, %v1067
        %v1112 = vmul.f32 %v992, %v1067
        %v1113 = vmul.f32 %v993, %v1067
        %v1114 = vmul.f32 %v994, %v1067
        %v1115 = vmul.f32 %v995, %v1067
        %v1164 = vrot.slane %v1068, 1
        %v1165 = vrot.slane %v1069, 1
        %v1166 = vsel %vm557, %v1164, %v1165
        %v1167 = vrot.slane %v1070, 1
        %v1168 = vsel %vm557, %v1165, %v1167
        %v1169 = vrot.slane %v1071, 1
        %v1170 = vrot.slane %v1072, 1
        %v1171 = vsel %vm557, %v1169, %v1170
        %v1172 = vrot.slane %v1073, 1
        %v1173 = vsel %vm557, %v1170, %v1172
        %v1174 = vrot.slane %v1074, 1
        %v1175 = vrot.slane %v1075, 1
        %v1176 = vsel %vm557, %v1174, %v1175
        %v1177 = vrot.slane %v1076, 1
        %v1178 = vsel %vm557, %v1175, %v1177
        %v1179 = vrot.slane %v1077, 1
        %v1180 = vrot.slane %v1078, 1
        %v1181 = vsel %vm557, %v1179, %v1180
        %v1182 = vrot.slane %v1079, 1
        %v1183 = vsel %vm557, %v1180, %v1182
        %v1184 = vrot.slane %v1080, 1
        %v1185 = vrot.slane %v1081, 1
        %v1186 = vsel %vm557, %v1184, %v1185
        %v1187 = vrot.slane %v1082, 1
        %v1188 = vsel %vm557, %v1185, %v1187
        %v1189 = vrot.slane %v1083, 1
        %v1190 = vrot.slane %v1084, 1
        %v1191 = vsel %vm557, %v1189, %v1190
        %v1192 = vrot.slane %v1085, 1
        %v1193 = vsel %vm557, %v1190, %v1192
        %v1194 = vrot.slane %v1086, 1
        %v1195 = vrot.slane %v1087, 1
        %v1196 = vsel %vm557, %v1194, %v1195
        %v1197 = vrot.slane %v1088, 1
        %v1198 = vsel %vm557, %v1195, %v1197
        %v1199 = vrot.slane %v1089, 1
        %v1200 = vrot.slane %v1090, 1
        %v1201 = vsel %vm557, %v1199, %v1200
        %v1202 = vrot.slane %v1091, 1
        %v1203 = vsel %vm557, %v1200, %v1202
        %v1204 = vrot.slane %v1092, 1
        %v1205 = vrot.slane %v1093, 1
        %v1206 = vsel %vm557, %v1204, %v1205
        %v1207 = vrot.slane %v1094, 1
        %v1208 = vsel %vm557, %v1205, %v1207
        %v1209 = vrot.slane %v1095, 1
        %v1210 = vrot.slane %v1096, 1
        %v1211 = vsel %vm557, %v1209, %v1210
        %v1212 = vrot.slane %v1097, 1
        %v1213 = vsel %vm557, %v1210, %v1212
        %v1214 = vrot.slane %v1098, 1
        %v1215 = vrot.slane %v1099, 1
        %v1216 = vsel %vm557, %v1214, %v1215
        %v1217 = vrot.slane %v1100, 1
        %v1218 = vsel %vm557, %v1215, %v1217
        %v1219 = vrot.slane %v1101, 1
        %v1220 = vrot.slane %v1102, 1
        %v1221 = vsel %vm557, %v1219, %v1220
        %v1222 = vrot.slane %v1103, 1
        %v1223 = vsel %vm557, %v1220, %v1222
        %v1224 = vrot.slane %v1104, 1
        %v1225 = vrot.slane %v1105, 1
        %v1226 = vsel %vm557, %v1224, %v1225
        %v1227 = vrot.slane %v1106, 1
        %v1228 = vsel %vm557, %v1225, %v1227
        %v1229 = vrot.slane %v1107, 1
        %v1230 = vrot.slane %v1108, 1
        %v1231 = vsel %vm557, %v1229, %v1230
        %v1232 = vrot.slane %v1109, 1
        %v1233 = vsel %vm557, %v1230, %v1232
        %v1234 = vrot.slane %v1110, 1
        %v1235 = vrot.slane %v1111, 1
        %v1236 = vsel %vm557, %v1234, %v1235
        %v1237 = vrot.slane %v1112, 1
        %v1238 = vsel %vm557, %v1235, %v1237
        %v1239 = vrot.slane %v1113, 1
        %v1240 = vrot.slane %v1114, 1
        %v1241 = vsel %vm557, %v1239, %v1240
        %v1242 = vrot.slane %v1115, 1
        %v1243 = vsel %vm557, %v1240, %v1242
        %v1276 = vadd.f32 %v1032, %v1166
        %v1277 = vadd.f32 %v1033, %v1168
        %v1278 = vadd.f32 %v1034, %v1171
        %v1279 = vadd.f32 %v1035, %v1173
        %v1280 = vadd.f32 %v1036, %v1176
        %v1281 = vadd.f32 %v1037, %v1178
        %v1282 = vadd.f32 %v1038, %v1181
        %v1283 = vadd.f32 %v1039, %v1183
        %v1284 = vadd.f32 %v1040, %v1186
        %v1285 = vadd.f32 %v1041, %v1188
        %v1286 = vadd.f32 %v1042, %v1191
        %v1287 = vadd.f32 %v1043, %v1193
        %v1288 = vadd.f32 %v1044, %v1196
        %v1289 = vadd.f32 %v1045, %v1198
        %v1290 = vadd.f32 %v1046, %v1201
        %v1291 = vadd.f32 %v1047, %v1203
        %v1292 = vadd.f32 %v1048, %v1206
        %v1293 = vadd.f32 %v1049, %v1208
        %v1294 = vadd.f32 %v1050, %v1211
        %v1295 = vadd.f32 %v1051, %v1213
        %v1296 = vadd.f32 %v1052, %v1216
        %v1297 = vadd.f32 %v1053, %v1218
        %v1298 = vadd.f32 %v1054, %v1221
        %v1299 = vadd.f32 %v1055, %v1223
        %v1300 = vadd.f32 %v1056, %v1226
        %v1301 = vadd.f32 %v1057, %v1228
        %v1302 = vadd.f32 %v1058, %v1231
        %v1303 = vadd.f32 %v1059, %v1233
        %v1304 = vadd.f32 %v1060, %v1236
        %v1305 = vadd.f32 %v1061, %v1238
        %v1306 = vadd.f32 %v1062, %v1241
        %v1307 = vadd.f32 %v1063, %v1243
        %v1308 = vlaneseq
        %v1309 = vshrl.u32 %v1308, 7
        %v1310 = vsub.s32 5, %v1309
        %v1311 = vrot.slane %v332, %v1310
        %v1312 = vmul.f32 %v948, %v1311
        %v1313 = vmul.f32 %v949, %v1311
        %v1314 = vmul.f32 %v950, %v1311
        %v1315 = vmul.f32 %v951, %v1311
        %v1316 = vmul.f32 %v952, %v1311
        %v1317 = vmul.f32 %v953, %v1311
        %v1318 = vmul.f32 %v954, %v1311
        %v1319 = vmul.f32 %v955, %v1311
        %v1320 = vmul.f32 %v956, %v1311
        %v1321 = vmul.f32 %v957, %v1311
        %v1322 = vmul.f32 %v958, %v1311
        %v1323 = vmul.f32 %v959, %v1311
        %v1324 = vmul.f32 %v960, %v1311
        %v1325 = vmul.f32 %v961, %v1311
        %v1326 = vmul.f32 %v962, %v1311
        %v1327 = vmul.f32 %v963, %v1311
        %v1328 = vmul.f32 %v964, %v1311
        %v1329 = vmul.f32 %v965, %v1311
        %v1330 = vmul.f32 %v966, %v1311
        %v1331 = vmul.f32 %v967, %v1311
        %v1332 = vmul.f32 %v968, %v1311
        %v1333 = vmul.f32 %v969, %v1311
        %v1334 = vmul.f32 %v970, %v1311
        %v1335 = vmul.f32 %v971, %v1311
        %v1336 = vmul.f32 %v972, %v1311
        %v1337 = vmul.f32 %v973, %v1311
        %v1338 = vmul.f32 %v974, %v1311
        %v1339 = vmul.f32 %v975, %v1311
        %v1340 = vmul.f32 %v976, %v1311
        %v1341 = vmul.f32 %v977, %v1311
        %v1342 = vmul.f32 %v978, %v1311
        %v1343 = vmul.f32 %v979, %v1311
        %v1344 = vmul.f32 %v980, %v1311
        %v1345 = vmul.f32 %v981, %v1311
        %v1346 = vmul.f32 %v982, %v1311
        %v1347 = vmul.f32 %v983, %v1311
        %v1348 = vmul.f32 %v984, %v1311
        %v1349 = vmul.f32 %v985, %v1311
        %v1350 = vmul.f32 %v986, %v1311
        %v1351 = vmul.f32 %v987, %v1311
        %v1352 = vmul.f32 %v988, %v1311
        %v1353 = vmul.f32 %v989, %v1311
        %v1354 = vmul.f32 %v990, %v1311
        %v1355 = vmul.f32 %v991, %v1311
        %v1356 = vmul.f32 %v992, %v1311
        %v1357 = vmul.f32 %v993, %v1311
        %v1358 = vmul.f32 %v994, %v1311
        %v1359 = vmul.f32 %v995, %v1311
        %v1408 = vrot.slane %v1312, 2
        %v1409 = vrot.slane %v1313, 2
        %v1410 = vsel %vm802, %v1408, %v1409
        %v1411 = vrot.slane %v1314, 2
        %v1412 = vsel %vm802, %v1409, %v1411
        %v1413 = vrot.slane %v1315, 2
        %v1414 = vrot.slane %v1316, 2
        %v1415 = vsel %vm802, %v1413, %v1414
        %v1416 = vrot.slane %v1317, 2
        %v1417 = vsel %vm802, %v1414, %v1416
        %v1418 = vrot.slane %v1318, 2
        %v1419 = vrot.slane %v1319, 2
        %v1420 = vsel %vm802, %v1418, %v1419
        %v1421 = vrot.slane %v1320, 2
        %v1422 = vsel %vm802, %v1419, %v1421
        %v1423 = vrot.slane %v1321, 2
        %v1424 = vrot.slane %v1322, 2
        %v1425 = vsel %vm802, %v1423, %v1424
        %v1426 = vrot.slane %v1323, 2
        %v1427 = vsel %vm802, %v1424, %v1426
        %v1428 = vrot.slane %v1324, 2
        %v1429 = vrot.slane %v1325, 2
        %v1430 = vsel %vm802, %v1428, %v1429
        %v1431 = vrot.slane %v1326, 2
        %v1432 = vsel %vm802, %v1429, %v1431
        %v1433 = vrot.slane %v1327, 2
        %v1434 = vrot.slane %v1328, 2
        %v1435 = vsel %vm802, %v1433, %v1434
        %v1436 = vrot.slane %v1329, 2
        %v1437 = vsel %vm802, %v1434, %v1436
        %v1438 = vrot.slane %v1330, 2
        %v1439 = vrot.slane %v1331, 2
        %v1440 = vsel %vm802, %v1438, %v1439
        %v1441 = vrot.slane %v1332, 2
        %v1442 = vsel %vm802, %v1439, %v1441
        %v1443 = vrot.slane %v1333, 2
        %v1444 = vrot.slane %v1334, 2
        %v1445 = vsel %vm802, %v1443, %v1444
        %v1446 = vrot.slane %v1335, 2
        %v1447 = vsel %vm802, %v1444, %v1446
        %v1448 = vrot.slane %v1336, 2
        %v1449 = vrot.slane %v1337, 2
        %v1450 = vsel %vm802, %v1448, %v1449
        %v1451 = vrot.slane %v1338, 2
        %v1452 = vsel %vm802, %v1449, %v1451
        %v1453 = vrot.slane %v1339, 2
        %v1454 = vrot.slane %v1340, 2
        %v1455 = vsel %vm802, %v1453, %v1454
        %v1456 = vrot.slane %v1341, 2
        %v1457 = vsel %vm802, %v1454, %v1456
        %v1458 = vrot.slane %v1342, 2
        %v1459 = vrot.slane %v1343, 2
        %v1460 = vsel %vm802, %v1458, %v1459
        %v1461 = vrot.slane %v1344, 2
        %v1462 = vsel %vm802, %v1459, %v1461
        %v1463 = vrot.slane %v1345, 2
        %v1464 = vrot.slane %v1346, 2
        %v1465 = vsel %vm802, %v1463, %v1464
        %v1466 = vrot.slane %v1347, 2
        %v1467 = vsel %vm802, %v1464, %v1466
        %v1468 = vrot.slane %v1348, 2
        %v1469 = vrot.slane %v1349, 2
        %v1470 = vsel %vm802, %v1468, %v1469
        %v1471 = vrot.slane %v1350, 2
        %v1472 = vsel %vm802, %v1469, %v1471
        %v1473 = vrot.slane %v1351, 2
        %v1474 = vrot.slane %v1352, 2
        %v1475 = vsel %vm802, %v1473, %v1474
        %v1476 = vrot.slane %v1353, 2
        %v1477 = vsel %vm802, %v1474, %v1476
        %v1478 = vrot.slane %v1354, 2
        %v1479 = vrot.slane %v1355, 2
        %v1480 = vsel %vm802, %v1478, %v1479
        %v1481 = vrot.slane %v1356, 2
        %v1482 = vsel %vm802, %v1479, %v1481
        %v1483 = vrot.slane %v1357, 2
        %v1484 = vrot.slane %v1358, 2
        %v1485 = vsel %vm802, %v1483, %v1484
        %v1486 = vrot.slane %v1359, 2
        %v1487 = vsel %vm802, %v1484, %v1486
        %v1520 = vadd.f32 %v1276, %v1410
        %v1521 = vadd.f32 %v1277, %v1412
        %v1522 = vadd.f32 %v1278, %v1415
        %v1523 = vadd.f32 %v1279, %v1417
        %v1524 = vadd.f32 %v1280, %v1420
        %v1525 = vadd.f32 %v1281, %v1422
        %v1526 = vadd.f32 %v1282, %v1425
        %v1527 = vadd.f32 %v1283, %v1427
        %v1528 = vadd.f32 %v1284, %v1430
        %v1529 = vadd.f32 %v1285, %v1432
        %v1530 = vadd.f32 %v1286, %v1435
        %v1531 = vadd.f32 %v1287, %v1437
        %v1532 = vadd.f32 %v1288, %v1440
        %v1533 = vadd.f32 %v1289, %v1442
        %v1534 = vadd.f32 %v1290, %v1445
        %v1535 = vadd.f32 %v1291, %v1447
        %v1536 = vadd.f32 %v1292, %v1450
        %v1537 = vadd.f32 %v1293, %v1452
        %v1538 = vadd.f32 %v1294, %v1455
        %v1539 = vadd.f32 %v1295, %v1457
        %v1540 = vadd.f32 %v1296, %v1460
        %v1541 = vadd.f32 %v1297, %v1462
        %v1542 = vadd.f32 %v1298, %v1465
        %v1543 = vadd.f32 %v1299, %v1467
        %v1544 = vadd.f32 %v1300, %v1470
        %v1545 = vadd.f32 %v1301, %v1472
        %v1546 = vadd.f32 %v1302, %v1475
        %v1547 = vadd.f32 %v1303, %v1477
        %v1548 = vadd.f32 %v1304, %v1480
        %v1549 = vadd.f32 %v1305, %v1482
        %v1550 = vadd.f32 %v1306, %v1485
        %v1551 = vadd.f32 %v1307, %v1487
        %s1552 = scalar_lea.vmem %s330, 48
        %v1553 = vld [vmem:[%s1552] sm:$0xff]
        %v1554 = vld [vmem:[%s1552 + $0x8] sm:$0xff]
        %v1555 = vld [vmem:[%s1552 + $0x10] sm:$0x3]
        %v1556 = vld [vmem:[%s1552 + $0x18] sm:$0xff]
        %v1557 = vld [vmem:[%s1552 + $0x20] sm:$0xff]
        %v1558 = vld [vmem:[%s1552 + $0x28] sm:$0x3]
        %v1559 = vld [vmem:[%s1552 + $0x30] sm:$0xff]
        %v1560 = vld [vmem:[%s1552 + $0x38] sm:$0xff]
        %v1561 = vld [vmem:[%s1552 + $0x40] sm:$0x3]
        %v1562 = vld [vmem:[%s1552 + $0x48] sm:$0xff]
        %v1563 = vld [vmem:[%s1552 + $0x50] sm:$0xff]
        %v1564 = vld [vmem:[%s1552 + $0x58] sm:$0x3]
        %v1565 = vld [vmem:[%s1552 + $0x60] sm:$0xff]
        %v1566 = vld [vmem:[%s1552 + $0x68] sm:$0xff]
        %v1567 = vld [vmem:[%s1552 + $0x70] sm:$0x3]
        %v1568 = vld [vmem:[%s1552 + $0x78] sm:$0xff]
        %v1569 = vld [vmem:[%s1552 + $0x80] sm:$0xff]
        %v1570 = vld [vmem:[%s1552 + $0x88] sm:$0x3]
        %v1571 = vld [vmem:[%s1552 + $0x90] sm:$0xff]
        %v1572 = vld [vmem:[%s1552 + $0x98] sm:$0xff]
        %v1573 = vld [vmem:[%s1552 + $0xa0] sm:$0x3]
        %v1574 = vld [vmem:[%s1552 + $0xa8] sm:$0xff]
        %v1575 = vld [vmem:[%s1552 + $0xb0] sm:$0xff]
        %v1576 = vld [vmem:[%s1552 + $0xb8] sm:$0x3]
        %v1577 = vld [vmem:[%s1552 + $0xc0] sm:$0xff]
        %v1578 = vld [vmem:[%s1552 + $0xc8] sm:$0xff]
        %v1579 = vld [vmem:[%s1552 + $0xd0] sm:$0x3]
        %v1580 = vld [vmem:[%s1552 + $0xd8] sm:$0xff]
        %v1581 = vld [vmem:[%s1552 + $0xe0] sm:$0xff]
        %v1582 = vld [vmem:[%s1552 + $0xe8] sm:$0x3]
        %v1583 = vld [vmem:[%s1552 + $0xf0] sm:$0xff]
        %v1584 = vld [vmem:[%s1552 + $0xf8] sm:$0xff]
        %v1585 = vld [vmem:[%s1552 + $0x100] sm:$0x3]
        %v1586 = vld [vmem:[%s1552 + $0x108] sm:$0xff]
        %v1587 = vld [vmem:[%s1552 + $0x110] sm:$0xff]
        %v1588 = vld [vmem:[%s1552 + $0x118] sm:$0x3]
        %v1589 = vld [vmem:[%s1552 + $0x120] sm:$0xff]
        %v1590 = vld [vmem:[%s1552 + $0x128] sm:$0xff]
        %v1591 = vld [vmem:[%s1552 + $0x130] sm:$0x3]
        %v1592 = vld [vmem:[%s1552 + $0x138] sm:$0xff]
        %v1593 = vld [vmem:[%s1552 + $0x140] sm:$0xff]
        %v1594 = vld [vmem:[%s1552 + $0x148] sm:$0x3]
        %v1595 = vld [vmem:[%s1552 + $0x150] sm:$0xff]
        %v1596 = vld [vmem:[%s1552 + $0x158] sm:$0xff]
        %v1597 = vld [vmem:[%s1552 + $0x160] sm:$0x3]
        %v1598 = vld [vmem:[%s1552 + $0x168] sm:$0xff]
        %v1599 = vld [vmem:[%s1552 + $0x170] sm:$0xff]
        %v1600 = vld [vmem:[%s1552 + $0x178] sm:$0x3]
        %v1601 = vlaneseq
        %v1602 = vshrl.u32 %v1601, 7
        %v1603 = vsub.s32 6, %v1602
        %v1604 = vrot.slane %v332, %v1603
        %v1605 = vmul.f32 %v1553, %v1604
        %v1606 = vmul.f32 %v1554, %v1604
        %v1607 = vmul.f32 %v1556, %v1604
        %v1608 = vmul.f32 %v1557, %v1604
        %v1609 = vmul.f32 %v1559, %v1604
        %v1610 = vmul.f32 %v1560, %v1604
        %v1611 = vmul.f32 %v1562, %v1604
        %v1612 = vmul.f32 %v1563, %v1604
        %v1613 = vmul.f32 %v1565, %v1604
        %v1614 = vmul.f32 %v1566, %v1604
        %v1615 = vmul.f32 %v1568, %v1604
        %v1616 = vmul.f32 %v1569, %v1604
        %v1617 = vmul.f32 %v1571, %v1604
        %v1618 = vmul.f32 %v1572, %v1604
        %v1619 = vmul.f32 %v1574, %v1604
        %v1620 = vmul.f32 %v1575, %v1604
        %v1621 = vmul.f32 %v1577, %v1604
        %v1622 = vmul.f32 %v1578, %v1604
        %v1623 = vmul.f32 %v1580, %v1604
        %v1624 = vmul.f32 %v1581, %v1604
        %v1625 = vmul.f32 %v1583, %v1604
        %v1626 = vmul.f32 %v1584, %v1604
        %v1627 = vmul.f32 %v1586, %v1604
        %v1628 = vmul.f32 %v1587, %v1604
        %v1629 = vmul.f32 %v1589, %v1604
        %v1630 = vmul.f32 %v1590, %v1604
        %v1631 = vmul.f32 %v1592, %v1604
        %v1632 = vmul.f32 %v1593, %v1604
        %v1633 = vmul.f32 %v1595, %v1604
        %v1634 = vmul.f32 %v1596, %v1604
        %v1635 = vmul.f32 %v1598, %v1604
        %v1636 = vmul.f32 %v1599, %v1604
        %v1637 = vadd.f32 %v1520, %v1605
        %v1638 = vadd.f32 %v1521, %v1606
        %v1639 = vadd.f32 %v1522, %v1607
        %v1640 = vadd.f32 %v1523, %v1608
        %v1641 = vadd.f32 %v1524, %v1609
        %v1642 = vadd.f32 %v1525, %v1610
        %v1643 = vadd.f32 %v1526, %v1611
        %v1644 = vadd.f32 %v1527, %v1612
        %v1645 = vadd.f32 %v1528, %v1613
        %v1646 = vadd.f32 %v1529, %v1614
        %v1647 = vadd.f32 %v1530, %v1615
        %v1648 = vadd.f32 %v1531, %v1616
        %v1649 = vadd.f32 %v1532, %v1617
        %v1650 = vadd.f32 %v1533, %v1618
        %v1651 = vadd.f32 %v1534, %v1619
        %v1652 = vadd.f32 %v1535, %v1620
        %v1653 = vadd.f32 %v1536, %v1621
        %v1654 = vadd.f32 %v1537, %v1622
        %v1655 = vadd.f32 %v1538, %v1623
        %v1656 = vadd.f32 %v1539, %v1624
        %v1657 = vadd.f32 %v1540, %v1625
        %v1658 = vadd.f32 %v1541, %v1626
        %v1659 = vadd.f32 %v1542, %v1627
        %v1660 = vadd.f32 %v1543, %v1628
        %v1661 = vadd.f32 %v1544, %v1629
        %v1662 = vadd.f32 %v1545, %v1630
        %v1663 = vadd.f32 %v1546, %v1631
        %v1664 = vadd.f32 %v1547, %v1632
        %v1665 = vadd.f32 %v1548, %v1633
        %v1666 = vadd.f32 %v1549, %v1634
        %v1667 = vadd.f32 %v1550, %v1635
        %v1668 = vadd.f32 %v1551, %v1636
        %v1669 = vlaneseq
        %v1670 = vshrl.u32 %v1669, 7
        %v1671 = vsub.s32 7, %v1670
        %v1672 = vrot.slane %v332, %v1671
        %v1673 = vmul.f32 %v1553, %v1672
        %v1674 = vmul.f32 %v1554, %v1672
        %v1675 = vmul.f32 %v1555, %v1672
        %v1676 = vmul.f32 %v1556, %v1672
        %v1677 = vmul.f32 %v1557, %v1672
        %v1678 = vmul.f32 %v1558, %v1672
        %v1679 = vmul.f32 %v1559, %v1672
        %v1680 = vmul.f32 %v1560, %v1672
        %v1681 = vmul.f32 %v1561, %v1672
        %v1682 = vmul.f32 %v1562, %v1672
        %v1683 = vmul.f32 %v1563, %v1672
        %v1684 = vmul.f32 %v1564, %v1672
        %v1685 = vmul.f32 %v1565, %v1672
        %v1686 = vmul.f32 %v1566, %v1672
        %v1687 = vmul.f32 %v1567, %v1672
        %v1688 = vmul.f32 %v1568, %v1672
        %v1689 = vmul.f32 %v1569, %v1672
        %v1690 = vmul.f32 %v1570, %v1672
        %v1691 = vmul.f32 %v1571, %v1672
        %v1692 = vmul.f32 %v1572, %v1672
        %v1693 = vmul.f32 %v1573, %v1672
        %v1694 = vmul.f32 %v1574, %v1672
        %v1695 = vmul.f32 %v1575, %v1672
        %v1696 = vmul.f32 %v1576, %v1672
        %v1697 = vmul.f32 %v1577, %v1672
        %v1698 = vmul.f32 %v1578, %v1672
        %v1699 = vmul.f32 %v1579, %v1672
        %v1700 = vmul.f32 %v1580, %v1672
        %v1701 = vmul.f32 %v1581, %v1672
        %v1702 = vmul.f32 %v1582, %v1672
        %v1703 = vmul.f32 %v1583, %v1672
        %v1704 = vmul.f32 %v1584, %v1672
        %v1705 = vmul.f32 %v1585, %v1672
        %v1706 = vmul.f32 %v1586, %v1672
        %v1707 = vmul.f32 %v1587, %v1672
        %v1708 = vmul.f32 %v1588, %v1672
        %v1709 = vmul.f32 %v1589, %v1672
        %v1710 = vmul.f32 %v1590, %v1672
        %v1711 = vmul.f32 %v1591, %v1672
        %v1712 = vmul.f32 %v1592, %v1672
        %v1713 = vmul.f32 %v1593, %v1672
        %v1714 = vmul.f32 %v1594, %v1672
        %v1715 = vmul.f32 %v1595, %v1672
        %v1716 = vmul.f32 %v1596, %v1672
        %v1717 = vmul.f32 %v1597, %v1672
        %v1718 = vmul.f32 %v1598, %v1672
        %v1719 = vmul.f32 %v1599, %v1672
        %v1720 = vmul.f32 %v1600, %v1672
        %v1769 = vrot.slane %v1673, 1
        %v1770 = vrot.slane %v1674, 1
        %v1771 = vsel %vm557, %v1769, %v1770
        %v1772 = vrot.slane %v1675, 1
        %v1773 = vsel %vm557, %v1770, %v1772
        %v1774 = vrot.slane %v1676, 1
        %v1775 = vrot.slane %v1677, 1
        %v1776 = vsel %vm557, %v1774, %v1775
        %v1777 = vrot.slane %v1678, 1
        %v1778 = vsel %vm557, %v1775, %v1777
        %v1779 = vrot.slane %v1679, 1
        %v1780 = vrot.slane %v1680, 1
        %v1781 = vsel %vm557, %v1779, %v1780
        %v1782 = vrot.slane %v1681, 1
        %v1783 = vsel %vm557, %v1780, %v1782
        %v1784 = vrot.slane %v1682, 1
        %v1785 = vrot.slane %v1683, 1
        %v1786 = vsel %vm557, %v1784, %v1785
        %v1787 = vrot.slane %v1684, 1
        %v1788 = vsel %vm557, %v1785, %v1787
        %v1789 = vrot.slane %v1685, 1
        %v1790 = vrot.slane %v1686, 1
        %v1791 = vsel %vm557, %v1789, %v1790
        %v1792 = vrot.slane %v1687, 1
        %v1793 = vsel %vm557, %v1790, %v1792
        %v1794 = vrot.slane %v1688, 1
        %v1795 = vrot.slane %v1689, 1
        %v1796 = vsel %vm557, %v1794, %v1795
        %v1797 = vrot.slane %v1690, 1
        %v1798 = vsel %vm557, %v1795, %v1797
        %v1799 = vrot.slane %v1691, 1
        %v1800 = vrot.slane %v1692, 1
        %v1801 = vsel %vm557, %v1799, %v1800
        %v1802 = vrot.slane %v1693, 1
        %v1803 = vsel %vm557, %v1800, %v1802
        %v1804 = vrot.slane %v1694, 1
        %v1805 = vrot.slane %v1695, 1
        %v1806 = vsel %vm557, %v1804, %v1805
        %v1807 = vrot.slane %v1696, 1
        %v1808 = vsel %vm557, %v1805, %v1807
        %v1809 = vrot.slane %v1697, 1
        %v1810 = vrot.slane %v1698, 1
        %v1811 = vsel %vm557, %v1809, %v1810
        %v1812 = vrot.slane %v1699, 1
        %v1813 = vsel %vm557, %v1810, %v1812
        %v1814 = vrot.slane %v1700, 1
        %v1815 = vrot.slane %v1701, 1
        %v1816 = vsel %vm557, %v1814, %v1815
        %v1817 = vrot.slane %v1702, 1
        %v1818 = vsel %vm557, %v1815, %v1817
        %v1819 = vrot.slane %v1703, 1
        %v1820 = vrot.slane %v1704, 1
        %v1821 = vsel %vm557, %v1819, %v1820
        %v1822 = vrot.slane %v1705, 1
        %v1823 = vsel %vm557, %v1820, %v1822
        %v1824 = vrot.slane %v1706, 1
        %v1825 = vrot.slane %v1707, 1
        %v1826 = vsel %vm557, %v1824, %v1825
        %v1827 = vrot.slane %v1708, 1
        %v1828 = vsel %vm557, %v1825, %v1827
        %v1829 = vrot.slane %v1709, 1
        %v1830 = vrot.slane %v1710, 1
        %v1831 = vsel %vm557, %v1829, %v1830
        %v1832 = vrot.slane %v1711, 1
        %v1833 = vsel %vm557, %v1830, %v1832
        %v1834 = vrot.slane %v1712, 1
        %v1835 = vrot.slane %v1713, 1
        %v1836 = vsel %vm557, %v1834, %v1835
        %v1837 = vrot.slane %v1714, 1
        %v1838 = vsel %vm557, %v1835, %v1837
        %v1839 = vrot.slane %v1715, 1
        %v1840 = vrot.slane %v1716, 1
        %v1841 = vsel %vm557, %v1839, %v1840
        %v1842 = vrot.slane %v1717, 1
        %v1843 = vsel %vm557, %v1840, %v1842
        %v1844 = vrot.slane %v1718, 1
        %v1845 = vrot.slane %v1719, 1
        %v1846 = vsel %vm557, %v1844, %v1845
        %v1847 = vrot.slane %v1720, 1
        %v1848 = vsel %vm557, %v1845, %v1847
        %v1881 = vadd.f32 %v1637, %v1771
        %v1882 = vadd.f32 %v1638, %v1773
        %v1883 = vadd.f32 %v1639, %v1776
        %v1884 = vadd.f32 %v1640, %v1778
        %v1885 = vadd.f32 %v1641, %v1781
        %v1886 = vadd.f32 %v1642, %v1783
        %v1887 = vadd.f32 %v1643, %v1786
        %v1888 = vadd.f32 %v1644, %v1788
        %v1889 = vadd.f32 %v1645, %v1791
        %v1890 = vadd.f32 %v1646, %v1793
        %v1891 = vadd.f32 %v1647, %v1796
        %v1892 = vadd.f32 %v1648, %v1798
        %v1893 = vadd.f32 %v1649, %v1801
        %v1894 = vadd.f32 %v1650, %v1803
        %v1895 = vadd.f32 %v1651, %v1806
        %v1896 = vadd.f32 %v1652, %v1808
        %v1897 = vadd.f32 %v1653, %v1811
        %v1898 = vadd.f32 %v1654, %v1813
        %v1899 = vadd.f32 %v1655, %v1816
        %v1900 = vadd.f32 %v1656, %v1818
        %v1901 = vadd.f32 %v1657, %v1821
        %v1902 = vadd.f32 %v1658, %v1823
        %v1903 = vadd.f32 %v1659, %v1826
        %v1904 = vadd.f32 %v1660, %v1828
        %v1905 = vadd.f32 %v1661, %v1831
        %v1906 = vadd.f32 %v1662, %v1833
        %v1907 = vadd.f32 %v1663, %v1836
        %v1908 = vadd.f32 %v1664, %v1838
        %v1909 = vadd.f32 %v1665, %v1841
        %v1910 = vadd.f32 %v1666, %v1843
        %v1911 = vadd.f32 %v1667, %v1846
        %v1912 = vadd.f32 %v1668, %v1848
        %v1913 = vlaneseq
        %v1914 = vshrl.u32 %v1913, 7
        %v1915 = vsub.s32 0, %v1914
        %v1916 = vrot.slane %v333, %v1915
        %v1917 = vmul.f32 %v1553, %v1916
        %v1918 = vmul.f32 %v1554, %v1916
        %v1919 = vmul.f32 %v1555, %v1916
        %v1920 = vmul.f32 %v1556, %v1916
        %v1921 = vmul.f32 %v1557, %v1916
        %v1922 = vmul.f32 %v1558, %v1916
        %v1923 = vmul.f32 %v1559, %v1916
        %v1924 = vmul.f32 %v1560, %v1916
        %v1925 = vmul.f32 %v1561, %v1916
        %v1926 = vmul.f32 %v1562, %v1916
        %v1927 = vmul.f32 %v1563, %v1916
        %v1928 = vmul.f32 %v1564, %v1916
        %v1929 = vmul.f32 %v1565, %v1916
        %v1930 = vmul.f32 %v1566, %v1916
        %v1931 = vmul.f32 %v1567, %v1916
        %v1932 = vmul.f32 %v1568, %v1916
        %v1933 = vmul.f32 %v1569, %v1916
        %v1934 = vmul.f32 %v1570, %v1916
        %v1935 = vmul.f32 %v1571, %v1916
        %v1936 = vmul.f32 %v1572, %v1916
        %v1937 = vmul.f32 %v1573, %v1916
        %v1938 = vmul.f32 %v1574, %v1916
        %v1939 = vmul.f32 %v1575, %v1916
        %v1940 = vmul.f32 %v1576, %v1916
        %v1941 = vmul.f32 %v1577, %v1916
        %v1942 = vmul.f32 %v1578, %v1916
        %v1943 = vmul.f32 %v1579, %v1916
        %v1944 = vmul.f32 %v1580, %v1916
        %v1945 = vmul.f32 %v1581, %v1916
        %v1946 = vmul.f32 %v1582, %v1916
        %v1947 = vmul.f32 %v1583, %v1916
        %v1948 = vmul.f32 %v1584, %v1916
        %v1949 = vmul.f32 %v1585, %v1916
        %v1950 = vmul.f32 %v1586, %v1916
        %v1951 = vmul.f32 %v1587, %v1916
        %v1952 = vmul.f32 %v1588, %v1916
        %v1953 = vmul.f32 %v1589, %v1916
        %v1954 = vmul.f32 %v1590, %v1916
        %v1955 = vmul.f32 %v1591, %v1916
        %v1956 = vmul.f32 %v1592, %v1916
        %v1957 = vmul.f32 %v1593, %v1916
        %v1958 = vmul.f32 %v1594, %v1916
        %v1959 = vmul.f32 %v1595, %v1916
        %v1960 = vmul.f32 %v1596, %v1916
        %v1961 = vmul.f32 %v1597, %v1916
        %v1962 = vmul.f32 %v1598, %v1916
        %v1963 = vmul.f32 %v1599, %v1916
        %v1964 = vmul.f32 %v1600, %v1916
        %v2013 = vrot.slane %v1917, 2
        %v2014 = vrot.slane %v1918, 2
        %v2015 = vsel %vm802, %v2013, %v2014
        %v2016 = vrot.slane %v1919, 2
        %v2017 = vsel %vm802, %v2014, %v2016
        %v2018 = vrot.slane %v1920, 2
        %v2019 = vrot.slane %v1921, 2
        %v2020 = vsel %vm802, %v2018, %v2019
        %v2021 = vrot.slane %v1922, 2
        %v2022 = vsel %vm802, %v2019, %v2021
        %v2023 = vrot.slane %v1923, 2
        %v2024 = vrot.slane %v1924, 2
        %v2025 = vsel %vm802, %v2023, %v2024
        %v2026 = vrot.slane %v1925, 2
        %v2027 = vsel %vm802, %v2024, %v2026
        %v2028 = vrot.slane %v1926, 2
        %v2029 = vrot.slane %v1927, 2
        %v2030 = vsel %vm802, %v2028, %v2029
        %v2031 = vrot.slane %v1928, 2
        %v2032 = vsel %vm802, %v2029, %v2031
        %v2033 = vrot.slane %v1929, 2
        %v2034 = vrot.slane %v1930, 2
        %v2035 = vsel %vm802, %v2033, %v2034
        %v2036 = vrot.slane %v1931, 2
        %v2037 = vsel %vm802, %v2034, %v2036
        %v2038 = vrot.slane %v1932, 2
        %v2039 = vrot.slane %v1933, 2
        %v2040 = vsel %vm802, %v2038, %v2039
        %v2041 = vrot.slane %v1934, 2
        %v2042 = vsel %vm802, %v2039, %v2041
        %v2043 = vrot.slane %v1935, 2
        %v2044 = vrot.slane %v1936, 2
        %v2045 = vsel %vm802, %v2043, %v2044
        %v2046 = vrot.slane %v1937, 2
        %v2047 = vsel %vm802, %v2044, %v2046
        %v2048 = vrot.slane %v1938, 2
        %v2049 = vrot.slane %v1939, 2
        %v2050 = vsel %vm802, %v2048, %v2049
        %v2051 = vrot.slane %v1940, 2
        %v2052 = vsel %vm802, %v2049, %v2051
        %v2053 = vrot.slane %v1941, 2
        %v2054 = vrot.slane %v1942, 2
        %v2055 = vsel %vm802, %v2053, %v2054
        %v2056 = vrot.slane %v1943, 2
        %v2057 = vsel %vm802, %v2054, %v2056
        %v2058 = vrot.slane %v1944, 2
        %v2059 = vrot.slane %v1945, 2
        %v2060 = vsel %vm802, %v2058, %v2059
        %v2061 = vrot.slane %v1946, 2
        %v2062 = vsel %vm802, %v2059, %v2061
        %v2063 = vrot.slane %v1947, 2
        %v2064 = vrot.slane %v1948, 2
        %v2065 = vsel %vm802, %v2063, %v2064
        %v2066 = vrot.slane %v1949, 2
        %v2067 = vsel %vm802, %v2064, %v2066
        %v2068 = vrot.slane %v1950, 2
        %v2069 = vrot.slane %v1951, 2
        %v2070 = vsel %vm802, %v2068, %v2069
        %v2071 = vrot.slane %v1952, 2
        %v2072 = vsel %vm802, %v2069, %v2071
        %v2073 = vrot.slane %v1953, 2
        %v2074 = vrot.slane %v1954, 2
        %v2075 = vsel %vm802, %v2073, %v2074
        %v2076 = vrot.slane %v1955, 2
        %v2077 = vsel %vm802, %v2074, %v2076
        %v2078 = vrot.slane %v1956, 2
        %v2079 = vrot.slane %v1957, 2
        %v2080 = vsel %vm802, %v2078, %v2079
        %v2081 = vrot.slane %v1958, 2
        %v2082 = vsel %vm802, %v2079, %v2081
        %v2083 = vrot.slane %v1959, 2
        %v2084 = vrot.slane %v1960, 2
        %v2085 = vsel %vm802, %v2083, %v2084
        %v2086 = vrot.slane %v1961, 2
        %v2087 = vsel %vm802, %v2084, %v2086
        %v2088 = vrot.slane %v1962, 2
        %v2089 = vrot.slane %v1963, 2
        %v2090 = vsel %vm802, %v2088, %v2089
        %v2091 = vrot.slane %v1964, 2
        %v2092 = vsel %vm802, %v2089, %v2091
        %v2125 = vadd.f32 %v1881, %v2015
        %v2126 = vadd.f32 %v1882, %v2017
        %v2127 = vadd.f32 %v1883, %v2020
        %v2128 = vadd.f32 %v1884, %v2022
        %v2129 = vadd.f32 %v1885, %v2025
        %v2130 = vadd.f32 %v1886, %v2027
        %v2131 = vadd.f32 %v1887, %v2030
        %v2132 = vadd.f32 %v1888, %v2032
        %v2133 = vadd.f32 %v1889, %v2035
        %v2134 = vadd.f32 %v1890, %v2037
        %v2135 = vadd.f32 %v1891, %v2040
        %v2136 = vadd.f32 %v1892, %v2042
        %v2137 = vadd.f32 %v1893, %v2045
        %v2138 = vadd.f32 %v1894, %v2047
        %v2139 = vadd.f32 %v1895, %v2050
        %v2140 = vadd.f32 %v1896, %v2052
        %v2141 = vadd.f32 %v1897, %v2055
        %v2142 = vadd.f32 %v1898, %v2057
        %v2143 = vadd.f32 %v1899, %v2060
        %v2144 = vadd.f32 %v1900, %v2062
        %v2145 = vadd.f32 %v1901, %v2065
        %v2146 = vadd.f32 %v1902, %v2067
        %v2147 = vadd.f32 %v1903, %v2070
        %v2148 = vadd.f32 %v1904, %v2072
        %v2149 = vadd.f32 %v1905, %v2075
        %v2150 = vadd.f32 %v1906, %v2077
        %v2151 = vadd.f32 %v1907, %v2080
        %v2152 = vadd.f32 %v1908, %v2082
        %v2153 = vadd.f32 %v1909, %v2085
        %v2154 = vadd.f32 %v1910, %v2087
        %v2155 = vadd.f32 %v1911, %v2090
        %v2156 = vadd.f32 %v1912, %v2092
        %v2157 = vadd.f32 %v2125, 3.0
        %v2158 = vadd.f32 %v2126, 3.0
        %v2159 = vadd.f32 %v2127, 3.0
        %v2160 = vadd.f32 %v2128, 3.0
        %v2161 = vadd.f32 %v2129, 3.0
        %v2162 = vadd.f32 %v2130, 3.0
        %v2163 = vadd.f32 %v2131, 3.0
        %v2164 = vadd.f32 %v2132, 3.0
        %v2165 = vadd.f32 %v2133, 3.0
        %v2166 = vadd.f32 %v2134, 3.0
        %v2167 = vadd.f32 %v2135, 3.0
        %v2168 = vadd.f32 %v2136, 3.0
        %v2169 = vadd.f32 %v2137, 3.0
        %v2170 = vadd.f32 %v2138, 3.0
        %v2171 = vadd.f32 %v2139, 3.0
        %v2172 = vadd.f32 %v2140, 3.0
        %v2173 = vadd.f32 %v2141, 3.0
        %v2174 = vadd.f32 %v2142, 3.0
        %v2175 = vadd.f32 %v2143, 3.0
        %v2176 = vadd.f32 %v2144, 3.0
        %v2177 = vadd.f32 %v2145, 3.0
        %v2178 = vadd.f32 %v2146, 3.0
        %v2179 = vadd.f32 %v2147, 3.0
        %v2180 = vadd.f32 %v2148, 3.0
        %v2181 = vadd.f32 %v2149, 3.0
        %v2182 = vadd.f32 %v2150, 3.0
        %v2183 = vadd.f32 %v2151, 3.0
        %v2184 = vadd.f32 %v2152, 3.0
        %v2185 = vadd.f32 %v2153, 3.0
        %v2186 = vadd.f32 %v2154, 3.0
        %v2187 = vadd.f32 %v2155, 3.0
        %v2188 = vadd.f32 %v2156, 3.0
        %v2189 = vmax.f32 %v2157, 0.0
        %v2190 = vmax.f32 %v2158, 0.0
        %v2191 = vmax.f32 %v2159, 0.0
        %v2192 = vmax.f32 %v2160, 0.0
        %v2193 = vmax.f32 %v2161, 0.0
        %v2194 = vmax.f32 %v2162, 0.0
        %v2195 = vmax.f32 %v2163, 0.0
        %v2196 = vmax.f32 %v2164, 0.0
        %v2197 = vmax.f32 %v2165, 0.0
        %v2198 = vmax.f32 %v2166, 0.0
        %v2199 = vmax.f32 %v2167, 0.0
        %v2200 = vmax.f32 %v2168, 0.0
        %v2201 = vmax.f32 %v2169, 0.0
        %v2202 = vmax.f32 %v2170, 0.0
        %v2203 = vmax.f32 %v2171, 0.0
        %v2204 = vmax.f32 %v2172, 0.0
        %v2205 = vmax.f32 %v2173, 0.0
        %v2206 = vmax.f32 %v2174, 0.0
        %v2207 = vmax.f32 %v2175, 0.0
        %v2208 = vmax.f32 %v2176, 0.0
        %v2209 = vmax.f32 %v2177, 0.0
        %v2210 = vmax.f32 %v2178, 0.0
        %v2211 = vmax.f32 %v2179, 0.0
        %v2212 = vmax.f32 %v2180, 0.0
        %v2213 = vmax.f32 %v2181, 0.0
        %v2214 = vmax.f32 %v2182, 0.0
        %v2215 = vmax.f32 %v2183, 0.0
        %v2216 = vmax.f32 %v2184, 0.0
        %v2217 = vmax.f32 %v2185, 0.0
        %v2218 = vmax.f32 %v2186, 0.0
        %v2219 = vmax.f32 %v2187, 0.0
        %v2220 = vmax.f32 %v2188, 0.0
        %v2221 = vmin.f32 %v2189, 6.0
        %v2222 = vmin.f32 %v2190, 6.0
        %v2223 = vmin.f32 %v2191, 6.0
        %v2224 = vmin.f32 %v2192, 6.0
        %v2225 = vmin.f32 %v2193, 6.0
        %v2226 = vmin.f32 %v2194, 6.0
        %v2227 = vmin.f32 %v2195, 6.0
        %v2228 = vmin.f32 %v2196, 6.0
        %v2229 = vmin.f32 %v2197, 6.0
        %v2230 = vmin.f32 %v2198, 6.0
        %v2231 = vmin.f32 %v2199, 6.0
        %v2232 = vmin.f32 %v2200, 6.0
        %v2233 = vmin.f32 %v2201, 6.0
        %v2234 = vmin.f32 %v2202, 6.0
        %v2235 = vmin.f32 %v2203, 6.0
        %v2236 = vmin.f32 %v2204, 6.0
        %v2237 = vmin.f32 %v2205, 6.0
        %v2238 = vmin.f32 %v2206, 6.0
        %v2239 = vmin.f32 %v2207, 6.0
        %v2240 = vmin.f32 %v2208, 6.0
        %v2241 = vmin.f32 %v2209, 6.0
        %v2242 = vmin.f32 %v2210, 6.0
        %v2243 = vmin.f32 %v2211, 6.0
        %v2244 = vmin.f32 %v2212, 6.0
        %v2245 = vmin.f32 %v2213, 6.0
        %v2246 = vmin.f32 %v2214, 6.0
        %v2247 = vmin.f32 %v2215, 6.0
        %v2248 = vmin.f32 %v2216, 6.0
        %v2249 = vmin.f32 %v2217, 6.0
        %v2250 = vmin.f32 %v2218, 6.0
        %v2251 = vmin.f32 %v2219, 6.0
        %v2252 = vmin.f32 %v2220, 6.0
        %v2253 = vmul.f32 %v2125, %v2221
        %v2254 = vmul.f32 %v2126, %v2222
        %v2255 = vmul.f32 %v2127, %v2223
        %v2256 = vmul.f32 %v2128, %v2224
        %v2257 = vmul.f32 %v2129, %v2225
        %v2258 = vmul.f32 %v2130, %v2226
        %v2259 = vmul.f32 %v2131, %v2227
        %v2260 = vmul.f32 %v2132, %v2228
        %v2261 = vmul.f32 %v2133, %v2229
        %v2262 = vmul.f32 %v2134, %v2230
        %v2263 = vmul.f32 %v2135, %v2231
        %v2264 = vmul.f32 %v2136, %v2232
        %v2265 = vmul.f32 %v2137, %v2233
        %v2266 = vmul.f32 %v2138, %v2234
        %v2267 = vmul.f32 %v2139, %v2235
        %v2268 = vmul.f32 %v2140, %v2236
        %v2269 = vmul.f32 %v2141, %v2237
        %v2270 = vmul.f32 %v2142, %v2238
        %v2271 = vmul.f32 %v2143, %v2239
        %v2272 = vmul.f32 %v2144, %v2240
        %v2273 = vmul.f32 %v2145, %v2241
        %v2274 = vmul.f32 %v2146, %v2242
        %v2275 = vmul.f32 %v2147, %v2243
        %v2276 = vmul.f32 %v2148, %v2244
        %v2277 = vmul.f32 %v2149, %v2245
        %v2278 = vmul.f32 %v2150, %v2246
        %v2279 = vmul.f32 %v2151, %v2247
        %v2280 = vmul.f32 %v2152, %v2248
        %v2281 = vmul.f32 %v2153, %v2249
        %v2282 = vmul.f32 %v2154, %v2250
        %v2283 = vmul.f32 %v2155, %v2251
        %v2284 = vmul.f32 %v2156, %v2252
        %v2285 = vmul.f32 %v2253, 0.16666667
        %v2286 = vmul.f32 %v2254, 0.16666667
        %v2287 = vmul.f32 %v2255, 0.16666667
        %v2288 = vmul.f32 %v2256, 0.16666667
        %v2289 = vmul.f32 %v2257, 0.16666667
        %v2290 = vmul.f32 %v2258, 0.16666667
        %v2291 = vmul.f32 %v2259, 0.16666667
        %v2292 = vmul.f32 %v2260, 0.16666667
        %v2293 = vmul.f32 %v2261, 0.16666667
        %v2294 = vmul.f32 %v2262, 0.16666667
        %v2295 = vmul.f32 %v2263, 0.16666667
        %v2296 = vmul.f32 %v2264, 0.16666667
        %v2297 = vmul.f32 %v2265, 0.16666667
        %v2298 = vmul.f32 %v2266, 0.16666667
        %v2299 = vmul.f32 %v2267, 0.16666667
        %v2300 = vmul.f32 %v2268, 0.16666667
        %v2301 = vmul.f32 %v2269, 0.16666667
        %v2302 = vmul.f32 %v2270, 0.16666667
        %v2303 = vmul.f32 %v2271, 0.16666667
        %v2304 = vmul.f32 %v2272, 0.16666667
        %v2305 = vmul.f32 %v2273, 0.16666667
        %v2306 = vmul.f32 %v2274, 0.16666667
        %v2307 = vmul.f32 %v2275, 0.16666667
        %v2308 = vmul.f32 %v2276, 0.16666667
        %v2309 = vmul.f32 %v2277, 0.16666667
        %v2310 = vmul.f32 %v2278, 0.16666667
        %v2311 = vmul.f32 %v2279, 0.16666667
        %v2312 = vmul.f32 %v2280, 0.16666667
        %v2313 = vmul.f32 %v2281, 0.16666667
        %v2314 = vmul.f32 %v2282, 0.16666667
        %v2315 = vmul.f32 %v2283, 0.16666667
        %v2316 = vmul.f32 %v2284, 0.16666667
        %v2317 = vpack.c.bf16 %v2286, %v2285
        %v2318 = vpack.c.bf16 %v2288, %v2287
        %v2319 = vpack.c.bf16 %v2290, %v2289
        %v2320 = vpack.c.bf16 %v2292, %v2291
        %v2321 = vpack.c.bf16 %v2294, %v2293
        %v2322 = vpack.c.bf16 %v2296, %v2295
        %v2323 = vpack.c.bf16 %v2298, %v2297
        %v2324 = vpack.c.bf16 %v2300, %v2299
        %v2325 = vpack.c.bf16 %v2302, %v2301
        %v2326 = vpack.c.bf16 %v2304, %v2303
        %v2327 = vpack.c.bf16 %v2306, %v2305
        %v2328 = vpack.c.bf16 %v2308, %v2307
        %v2329 = vpack.c.bf16 %v2310, %v2309
        %v2330 = vpack.c.bf16 %v2312, %v2311
        %v2331 = vpack.c.bf16 %v2314, %v2313
        %v2332 = vpack.c.bf16 %v2316, %v2315
        %v2333 = vld [vmem:[%s3] sm:$0xf]
        %v2334 = vld [vmem:[%s3 + $0x4] sm:$0xf]
        %v2335 = vld [vmem:[%s3 + $0x8] sm:$0xf]
        %v2336 = vld [vmem:[%s3 + $0xc] sm:$0xf]
        %v2337 = vld [vmem:[%s3 + $0x10] sm:$0xf]
        %v2338 = vld [vmem:[%s3 + $0x14] sm:$0xf]
        %v2339 = vld [vmem:[%s3 + $0x18] sm:$0xf]
        %v2340 = vld [vmem:[%s3 + $0x1c] sm:$0xf]
        %v2341 = vld [vmem:[%s3 + $0x20] sm:$0xf]
        %v2342 = vld [vmem:[%s3 + $0x24] sm:$0xf]
        %v2343 = vld [vmem:[%s3 + $0x28] sm:$0xf]
        %v2344 = vld [vmem:[%s3 + $0x2c] sm:$0xf]
        %v2345 = vld [vmem:[%s3 + $0x30] sm:$0xf]
        %v2346 = vld [vmem:[%s3 + $0x34] sm:$0xf]
        %v2347 = vld [vmem:[%s3 + $0x38] sm:$0xf]
        %v2348 = vld [vmem:[%s3 + $0x3c] sm:$0xf]
        %v2349 = vld [vmem:[%s4] sm:$0x1]
        %v2351 = vlaneseq
        %v2352 = vshrl.u32 %v2351, 7
        %v2353 = vsub.s32 0, %v2352
        %v2354 = vrot.slane %v2349, %v2353
        %v2372 = vunpack.c.l.b16 %v2333
        %v2373 = vunpack.c.l.b16 %v2334
        %v2374 = vunpack.c.l.b16 %v2335
        %v2375 = vunpack.c.l.b16 %v2336
        %v2376 = vunpack.c.l.b16 %v2337
        %v2377 = vunpack.c.l.b16 %v2338
        %v2378 = vunpack.c.l.b16 %v2339
        %v2379 = vunpack.c.l.b16 %v2340
        %v2380 = vunpack.c.l.b16 %v2341
        %v2381 = vunpack.c.l.b16 %v2342
        %v2382 = vunpack.c.l.b16 %v2343
        %v2383 = vunpack.c.l.b16 %v2344
        %v2384 = vunpack.c.l.b16 %v2345
        %v2385 = vunpack.c.l.b16 %v2346
        %v2386 = vunpack.c.l.b16 %v2347
        %v2387 = vunpack.c.l.b16 %v2348
        %v2388 = vpack.c.b16 %v2373, %v2372
        %v2389 = vpack.c.b16 %v2375, %v2374
        %v2390 = vpack.c.b16 %v2377, %v2376
        %v2391 = vpack.c.b16 %v2379, %v2378
        %v2392 = vpack.c.b16 %v2381, %v2380
        %v2393 = vpack.c.b16 %v2383, %v2382
        %v2394 = vpack.c.b16 %v2385, %v2384
        %v2395 = vpack.c.b16 %v2387, %v2386
        %2404 = vmatprep.subr.bf16.mxu0 0
        %2405 = vmatpush1.bf16.msra.mxu0 %v2395
        %2406 = vmatprep.subr.bf16.mxu0 0
        %2407 = vmatpush1.bf16.msra.mxu0 %v2394
        %2408 = vmatprep.subr.bf16.mxu0 0
        %2409 = vmatpush1.bf16.msra.mxu0 %v2393
        %2410 = vmatprep.subr.bf16.mxu0 0
        %2411 = vmatpush1.bf16.msra.mxu0 %v2392
        %2412 = vmatprep.subr.bf16.mxu0 0
        %2413 = vmatpush1.bf16.msra.mxu0 %v2391
        %2414 = vmatprep.subr.bf16.mxu0 0
        %2415 = vmatpush1.bf16.msra.mxu0 %v2390
        %2416 = vmatprep.subr.bf16.mxu0 0
        %2417 = vmatpush1.bf16.msra.mxu0 %v2389
        %2418 = vmatprep.subr.bf16.mxu0 0
        %2419 = vmatpush1.bf16.msra.mxu0 %v2388
        %2420 = vmatprep.subr.bf16.mxu0 0
        %2421 = vmatpush2.bf16.msra.mxu0 0
        %2422 = vmatprep.subr.bf16.mxu0 0
        %2423 = vmatpush2.bf16.msra.mxu0 0
        %2424 = vmatprep.subr.bf16.mxu0 0
        %2425 = vmatpush2.bf16.msra.mxu0 0
        %2426 = vmatprep.subr.bf16.mxu0 0
        %2427 = vmatpush2.bf16.msra.mxu0 0
        %2428 = vmatprep.subr.bf16.mxu0 0
        %2429 = vmatpush2.bf16.msra.mxu0 0
        %2430 = vmatprep.subr.bf16.mxu0 0
        %2431 = vmatpush2.bf16.msra.mxu0 0
        %2432 = vmatprep.subr.bf16.mxu0 0
        %2433 = vmatpush2.bf16.msra.mxu0 0
        %2434 = vmatprep.subr.bf16.mxu0 0
        %2435 = vmatpush2.bf16.msra.mxu0 0
        %2436 = vmatprep.mubr.bf16.mxu0 0
        %2437 = vmatmul.mubr.bf16.gmra.mxu0 %v2317
        %v2438 = vpop.f32.mrf.mxu0
        %v2439 = vadd.f32 %v2354, %v2438
        %v2440 = vpop.f32.mrf.mxu0
        %v2441 = vpop.f32.mrf.mxu0
        %v2442 = vadd.f32 %v2354, %v2441
        %v2443 = vpop.f32.mrf.mxu0
        %2444 = vmatprep.mubr.bf16.mxu0 0
        %2445 = vmatmul.mubr.bf16.gmra.mxu0 %v2318
        %v2446 = vpop.f32.mrf.mxu0
        %v2447 = vadd.f32 %v2354, %v2446
        %v2448 = vpop.f32.mrf.mxu0
        %v2449 = vpop.f32.mrf.mxu0
        %v2450 = vadd.f32 %v2354, %v2449
        %v2451 = vpop.f32.mrf.mxu0
        %2452 = vmatprep.mubr.bf16.mxu0 0
        %2453 = vmatmul.mubr.bf16.gmra.mxu0 %v2319
        %v2454 = vpop.f32.mrf.mxu0
        %v2455 = vadd.f32 %v2354, %v2454
        %v2456 = vpop.f32.mrf.mxu0
        %v2457 = vpop.f32.mrf.mxu0
        %v2458 = vadd.f32 %v2354, %v2457
        %v2459 = vpop.f32.mrf.mxu0
        %2460 = vmatprep.mubr.bf16.mxu0 0
        %2461 = vmatmul.mubr.bf16.gmra.mxu0 %v2320
        %v2462 = vpop.f32.mrf.mxu0
        %v2463 = vadd.f32 %v2354, %v2462
        %v2464 = vpop.f32.mrf.mxu0
        %v2465 = vpop.f32.mrf.mxu0
        %v2466 = vadd.f32 %v2354, %v2465
        %v2467 = vpop.f32.mrf.mxu0
        %2468 = vmatprep.mubr.bf16.mxu0 0
        %2469 = vmatmul.mubr.bf16.gmra.mxu0 %v2321
        %v2470 = vpop.f32.mrf.mxu0
        %v2471 = vadd.f32 %v2354, %v2470
        %v2472 = vpop.f32.mrf.mxu0
        %v2473 = vpop.f32.mrf.mxu0
        %v2474 = vadd.f32 %v2354, %v2473
        %v2475 = vpop.f32.mrf.mxu0
        %2476 = vmatprep.mubr.bf16.mxu0 0
        %2477 = vmatmul.mubr.bf16.gmra.mxu0 %v2322
        %v2478 = vpop.f32.mrf.mxu0
        %v2479 = vadd.f32 %v2354, %v2478
        %v2480 = vpop.f32.mrf.mxu0
        %v2481 = vpop.f32.mrf.mxu0
        %v2482 = vadd.f32 %v2354, %v2481
        %v2483 = vpop.f32.mrf.mxu0
        %2484 = vmatprep.mubr.bf16.mxu0 0
        %2485 = vmatmul.mubr.bf16.gmra.mxu0 %v2323
        %v2486 = vpop.f32.mrf.mxu0
        %v2487 = vadd.f32 %v2354, %v2486
        %v2488 = vpop.f32.mrf.mxu0
        %v2489 = vpop.f32.mrf.mxu0
        %v2490 = vadd.f32 %v2354, %v2489
        %v2491 = vpop.f32.mrf.mxu0
        %2492 = vmatprep.mubr.bf16.mxu0 0
        %2493 = vmatmul.mubr.bf16.gmra.mxu0 %v2324
        %v2494 = vpop.f32.mrf.mxu0
        %v2495 = vadd.f32 %v2354, %v2494
        %v2496 = vpop.f32.mrf.mxu0
        %v2497 = vpop.f32.mrf.mxu0
        %v2498 = vadd.f32 %v2354, %v2497
        %v2499 = vpop.f32.mrf.mxu0
        %2500 = vmatprep.mubr.bf16.mxu0 0
        %2501 = vmatmul.mubr.bf16.gmra.mxu0 %v2325
        %v2502 = vpop.f32.mrf.mxu0
        %v2503 = vadd.f32 %v2354, %v2502
        %v2504 = vpop.f32.mrf.mxu0
        %v2505 = vpop.f32.mrf.mxu0
        %v2506 = vadd.f32 %v2354, %v2505
        %v2507 = vpop.f32.mrf.mxu0
        %2508 = vmatprep.mubr.bf16.mxu0 0
        %2509 = vmatmul.mubr.bf16.gmra.mxu0 %v2326
        %v2510 = vpop.f32.mrf.mxu0
        %v2511 = vadd.f32 %v2354, %v2510
        %v2512 = vpop.f32.mrf.mxu0
        %v2513 = vpop.f32.mrf.mxu0
        %v2514 = vadd.f32 %v2354, %v2513
        %v2515 = vpop.f32.mrf.mxu0
        %2516 = vmatprep.mubr.bf16.mxu0 0
        %2517 = vmatmul.mubr.bf16.gmra.mxu0 %v2327
        %v2518 = vpop.f32.mrf.mxu0
        %v2519 = vadd.f32 %v2354, %v2518
        %v2520 = vpop.f32.mrf.mxu0
        %v2521 = vpop.f32.mrf.mxu0
        %v2522 = vadd.f32 %v2354, %v2521
        %v2523 = vpop.f32.mrf.mxu0
        %2524 = vmatprep.mubr.bf16.mxu0 0
        %2525 = vmatmul.mubr.bf16.gmra.mxu0 %v2328
        %v2526 = vpop.f32.mrf.mxu0
        %v2527 = vadd.f32 %v2354, %v2526
        %v2528 = vpop.f32.mrf.mxu0
        %v2529 = vpop.f32.mrf.mxu0
        %v2530 = vadd.f32 %v2354, %v2529
        %v2531 = vpop.f32.mrf.mxu0
        %2532 = vmatprep.mubr.bf16.mxu0 0
        %2533 = vmatmul.mubr.bf16.gmra.mxu0 %v2329
        %v2534 = vpop.f32.mrf.mxu0
        %v2535 = vadd.f32 %v2354, %v2534
        %v2536 = vpop.f32.mrf.mxu0
        %v2537 = vpop.f32.mrf.mxu0
        %v2538 = vadd.f32 %v2354, %v2537
        %v2539 = vpop.f32.mrf.mxu0
        %2540 = vmatprep.mubr.bf16.mxu0 0
        %2541 = vmatmul.mubr.bf16.gmra.mxu0 %v2330
        %v2542 = vpop.f32.mrf.mxu0
        %v2543 = vadd.f32 %v2354, %v2542
        %v2544 = vpop.f32.mrf.mxu0
        %v2545 = vpop.f32.mrf.mxu0
        %v2546 = vadd.f32 %v2354, %v2545
        %v2547 = vpop.f32.mrf.mxu0
        %2548 = vmatprep.mubr.bf16.mxu0 0
        %2549 = vmatmul.mubr.bf16.gmra.mxu0 %v2331
        %v2550 = vpop.f32.mrf.mxu0
        %v2551 = vadd.f32 %v2354, %v2550
        %v2552 = vpop.f32.mrf.mxu0
        %v2553 = vpop.f32.mrf.mxu0
        %v2554 = vadd.f32 %v2354, %v2553
        %v2555 = vpop.f32.mrf.mxu0
        %2556 = vmatprep.mubr.bf16.mxu0 0
        %2557 = vmatmul.mubr.bf16.gmra.mxu0 %v2332
        %v2558 = vpop.f32.mrf.mxu0
        %v2559 = vadd.f32 %v2354, %v2558
        %v2560 = vpop.f32.mrf.mxu0
        %v2561 = vpop.f32.mrf.mxu0
        %v2562 = vadd.f32 %v2354, %v2561
        %v2563 = vpop.f32.mrf.mxu0
        %2564 = vdwg.mxu0
        %v2565 = vadd.f32 %v2439, 3.0
        %v2566 = vadd.f32 %v2442, 3.0
        %v2567 = vadd.f32 %v2447, 3.0
        %v2568 = vadd.f32 %v2450, 3.0
        %v2569 = vadd.f32 %v2455, 3.0
        %v2570 = vadd.f32 %v2458, 3.0
        %v2571 = vadd.f32 %v2463, 3.0
        %v2572 = vadd.f32 %v2466, 3.0
        %v2573 = vadd.f32 %v2471, 3.0
        %v2574 = vadd.f32 %v2474, 3.0
        %v2575 = vadd.f32 %v2479, 3.0
        %v2576 = vadd.f32 %v2482, 3.0
        %v2577 = vadd.f32 %v2487, 3.0
        %v2578 = vadd.f32 %v2490, 3.0
        %v2579 = vadd.f32 %v2495, 3.0
        %v2580 = vadd.f32 %v2498, 3.0
        %v2581 = vadd.f32 %v2503, 3.0
        %v2582 = vadd.f32 %v2506, 3.0
        %v2583 = vadd.f32 %v2511, 3.0
        %v2584 = vadd.f32 %v2514, 3.0
        %v2585 = vadd.f32 %v2519, 3.0
        %v2586 = vadd.f32 %v2522, 3.0
        %v2587 = vadd.f32 %v2527, 3.0
        %v2588 = vadd.f32 %v2530, 3.0
        %v2589 = vadd.f32 %v2535, 3.0
        %v2590 = vadd.f32 %v2538, 3.0
        %v2591 = vadd.f32 %v2543, 3.0
        %v2592 = vadd.f32 %v2546, 3.0
        %v2593 = vadd.f32 %v2551, 3.0
        %v2594 = vadd.f32 %v2554, 3.0
        %v2595 = vadd.f32 %v2559, 3.0
        %v2596 = vadd.f32 %v2562, 3.0
        %v2597 = vmax.f32 %v2565, 0.0
        %v2598 = vmax.f32 %v2566, 0.0
        %v2599 = vmax.f32 %v2567, 0.0
        %v2600 = vmax.f32 %v2568, 0.0
        %v2601 = vmax.f32 %v2569, 0.0
        %v2602 = vmax.f32 %v2570, 0.0
        %v2603 = vmax.f32 %v2571, 0.0
        %v2604 = vmax.f32 %v2572, 0.0
        %v2605 = vmax.f32 %v2573, 0.0
        %v2606 = vmax.f32 %v2574, 0.0
        %v2607 = vmax.f32 %v2575, 0.0
        %v2608 = vmax.f32 %v2576, 0.0
        %v2609 = vmax.f32 %v2577, 0.0
        %v2610 = vmax.f32 %v2578, 0.0
        %v2611 = vmax.f32 %v2579, 0.0
        %v2612 = vmax.f32 %v2580, 0.0
        %v2613 = vmax.f32 %v2581, 0.0
        %v2614 = vmax.f32 %v2582, 0.0
        %v2615 = vmax.f32 %v2583, 0.0
        %v2616 = vmax.f32 %v2584, 0.0
        %v2617 = vmax.f32 %v2585, 0.0
        %v2618 = vmax.f32 %v2586, 0.0
        %v2619 = vmax.f32 %v2587, 0.0
        %v2620 = vmax.f32 %v2588, 0.0
        %v2621 = vmax.f32 %v2589, 0.0
        %v2622 = vmax.f32 %v2590, 0.0
        %v2623 = vmax.f32 %v2591, 0.0
        %v2624 = vmax.f32 %v2592, 0.0
        %v2625 = vmax.f32 %v2593, 0.0
        %v2626 = vmax.f32 %v2594, 0.0
        %v2627 = vmax.f32 %v2595, 0.0
        %v2628 = vmax.f32 %v2596, 0.0
        %v2629 = vmin.f32 %v2597, 6.0
        %v2630 = vmin.f32 %v2598, 6.0
        %v2631 = vmin.f32 %v2599, 6.0
        %v2632 = vmin.f32 %v2600, 6.0
        %v2633 = vmin.f32 %v2601, 6.0
        %v2634 = vmin.f32 %v2602, 6.0
        %v2635 = vmin.f32 %v2603, 6.0
        %v2636 = vmin.f32 %v2604, 6.0
        %v2637 = vmin.f32 %v2605, 6.0
        %v2638 = vmin.f32 %v2606, 6.0
        %v2639 = vmin.f32 %v2607, 6.0
        %v2640 = vmin.f32 %v2608, 6.0
        %v2641 = vmin.f32 %v2609, 6.0
        %v2642 = vmin.f32 %v2610, 6.0
        %v2643 = vmin.f32 %v2611, 6.0
        %v2644 = vmin.f32 %v2612, 6.0
        %v2645 = vmin.f32 %v2613, 6.0
        %v2646 = vmin.f32 %v2614, 6.0
        %v2647 = vmin.f32 %v2615, 6.0
        %v2648 = vmin.f32 %v2616, 6.0
        %v2649 = vmin.f32 %v2617, 6.0
        %v2650 = vmin.f32 %v2618, 6.0
        %v2651 = vmin.f32 %v2619, 6.0
        %v2652 = vmin.f32 %v2620, 6.0
        %v2653 = vmin.f32 %v2621, 6.0
        %v2654 = vmin.f32 %v2622, 6.0
        %v2655 = vmin.f32 %v2623, 6.0
        %v2656 = vmin.f32 %v2624, 6.0
        %v2657 = vmin.f32 %v2625, 6.0
        %v2658 = vmin.f32 %v2626, 6.0
        %v2659 = vmin.f32 %v2627, 6.0
        %v2660 = vmin.f32 %v2628, 6.0
        %v2661 = vmul.f32 %v2439, %v2629
        %v2662 = vmul.f32 %v2442, %v2630
        %v2663 = vmul.f32 %v2447, %v2631
        %v2664 = vmul.f32 %v2450, %v2632
        %v2665 = vmul.f32 %v2455, %v2633
        %v2666 = vmul.f32 %v2458, %v2634
        %v2667 = vmul.f32 %v2463, %v2635
        %v2668 = vmul.f32 %v2466, %v2636
        %v2669 = vmul.f32 %v2471, %v2637
        %v2670 = vmul.f32 %v2474, %v2638
        %v2671 = vmul.f32 %v2479, %v2639
        %v2672 = vmul.f32 %v2482, %v2640
        %v2673 = vmul.f32 %v2487, %v2641
        %v2674 = vmul.f32 %v2490, %v2642
        %v2675 = vmul.f32 %v2495, %v2643
        %v2676 = vmul.f32 %v2498, %v2644
        %v2677 = vmul.f32 %v2503, %v2645
        %v2678 = vmul.f32 %v2506, %v2646
        %v2679 = vmul.f32 %v2511, %v2647
        %v2680 = vmul.f32 %v2514, %v2648
        %v2681 = vmul.f32 %v2519, %v2649
        %v2682 = vmul.f32 %v2522, %v2650
        %v2683 = vmul.f32 %v2527, %v2651
        %v2684 = vmul.f32 %v2530, %v2652
        %v2685 = vmul.f32 %v2535, %v2653
        %v2686 = vmul.f32 %v2538, %v2654
        %v2687 = vmul.f32 %v2543, %v2655
        %v2688 = vmul.f32 %v2546, %v2656
        %v2689 = vmul.f32 %v2551, %v2657
        %v2690 = vmul.f32 %v2554, %v2658
        %v2691 = vmul.f32 %v2559, %v2659
        %v2692 = vmul.f32 %v2562, %v2660
        %v2693 = vmul.f32 %v2661, 0.16666667
        %v2694 = vmul.f32 %v2662, 0.16666667
        %v2695 = vmul.f32 %v2663, 0.16666667
        %v2696 = vmul.f32 %v2664, 0.16666667
        %v2697 = vmul.f32 %v2665, 0.16666667
        %v2698 = vmul.f32 %v2666, 0.16666667
        %v2699 = vmul.f32 %v2667, 0.16666667
        %v2700 = vmul.f32 %v2668, 0.16666667
        %v2701 = vmul.f32 %v2669, 0.16666667
        %v2702 = vmul.f32 %v2670, 0.16666667
        %v2703 = vmul.f32 %v2671, 0.16666667
        %v2704 = vmul.f32 %v2672, 0.16666667
        %v2705 = vmul.f32 %v2673, 0.16666667
        %v2706 = vmul.f32 %v2674, 0.16666667
        %v2707 = vmul.f32 %v2675, 0.16666667
        %v2708 = vmul.f32 %v2676, 0.16666667
        %v2709 = vmul.f32 %v2677, 0.16666667
        %v2710 = vmul.f32 %v2678, 0.16666667
        %v2711 = vmul.f32 %v2679, 0.16666667
        %v2712 = vmul.f32 %v2680, 0.16666667
        %v2713 = vmul.f32 %v2681, 0.16666667
        %v2714 = vmul.f32 %v2682, 0.16666667
        %v2715 = vmul.f32 %v2683, 0.16666667
        %v2716 = vmul.f32 %v2684, 0.16666667
        %v2717 = vmul.f32 %v2685, 0.16666667
        %v2718 = vmul.f32 %v2686, 0.16666667
        %v2719 = vmul.f32 %v2687, 0.16666667
        %v2720 = vmul.f32 %v2688, 0.16666667
        %v2721 = vmul.f32 %v2689, 0.16666667
        %v2722 = vmul.f32 %v2690, 0.16666667
        %v2723 = vmul.f32 %v2691, 0.16666667
        %v2724 = vmul.f32 %v2692, 0.16666667
        %v2725 = vadd.f32 %v2693, %v2694
        %v2726 = vadd.f32 %v2725, %v2695
        %v2727 = vadd.f32 %v2726, %v2696
        %v2728 = vadd.f32 %v2727, %v2697
        %v2729 = vadd.f32 %v2728, %v2698
        %v2730 = vadd.f32 %v2729, %v2699
        %v2731 = vadd.f32 %v2730, %v2700
        %v2732 = vadd.f32 %v2731, %v2701
        %v2733 = vadd.f32 %v2732, %v2702
        %v2734 = vadd.f32 %v2733, %v2703
        %v2735 = vadd.f32 %v2734, %v2704
        %v2736 = vadd.f32 %v2735, %v2705
        %v2737 = vadd.f32 %v2736, %v2706
        %v2738 = vadd.f32 %v2737, %v2707
        %v2739 = vadd.f32 %v2738, %v2708
        %v2740 = vadd.f32 %v2739, %v2709
        %v2741 = vadd.f32 %v2740, %v2710
        %v2742 = vadd.f32 %v2741, %v2711
        %v2743 = vadd.f32 %v2742, %v2712
        %v2744 = vadd.f32 %v2743, %v2713
        %v2745 = vadd.f32 %v2744, %v2714
        %v2746 = vadd.f32 %v2745, %v2715
        %v2747 = vadd.f32 %v2746, %v2716
        %v2748 = vadd.f32 %v2747, %v2717
        %v2749 = vadd.f32 %v2748, %v2718
        %v2750 = vadd.f32 %v2749, %v2719
        %v2751 = vadd.f32 %v2750, %v2720
        %v2752 = vadd.f32 %v2751, %v2721
        %v2753 = vadd.f32 %v2752, %v2722
        %v2754 = vadd.f32 %v2753, %v2723
        %v2755 = vadd.f32 %v2754, %v2724
        %v2756 = vrot.slane %v2755, 4
        %v2757 = vadd.f32 %v2755, %v2756
        %v2758 = vrot.slane %v2757, 2
        %v2759 = vadd.f32 %v2757, %v2758
        %v2760 = vrot.slane %v2759, 1
        %v2761 = vadd.f32 %v2759, %v2760
        %v2762 = vrcp.pop 256.0
        %v2763 = vmul.f32 %v2761, %v2762
        %v2764 = vld [vmem:[%s5] sm:$0xff]
        %v2765 = vld [vmem:[%s5 + $0x8] sm:$0xff]
        %v2766 = vld [vmem:[%s5 + $0x10] sm:$0xff]
        %v2767 = vld [vmem:[%s5 + $0x18] sm:$0xff]
        %v2768 = vld [vmem:[%s5 + $0x20] sm:$0xff]
        %v2769 = vld [vmem:[%s5 + $0x28] sm:$0xff]
        %v2770 = vld [vmem:[%s5 + $0x30] sm:$0xff]
        %v2771 = vld [vmem:[%s5 + $0x38] sm:$0xff]
        %v2772 = vld [vmem:[%s5 + $0x40] sm:$0xff]
        %v2773 = vld [vmem:[%s5 + $0x48] sm:$0xff]
        %v2774 = vld [vmem:[%s5 + $0x50] sm:$0xff]
        %v2775 = vld [vmem:[%s5 + $0x58] sm:$0xff]
        %v2776 = vld [vmem:[%s5 + $0x60] sm:$0xff]
        %v2777 = vld [vmem:[%s5 + $0x68] sm:$0xff]
        %v2778 = vld [vmem:[%s5 + $0x70] sm:$0xff]
        %v2779 = vld [vmem:[%s5 + $0x78] sm:$0xff]
        %v2780 = vld [vmem:[%s6] sm:$0x1]
        %2781 = vmatprep.subr.mxu0 0.0
        %2782 = vmatpush1.msra.mxu0 %v2779
        %2783 = vmatprep.subr.mxu0 0.0
        %2784 = vmatpush1.msra.mxu0 %v2778
        %2785 = vmatprep.subr.mxu0 0.0
        %2786 = vmatpush1.msra.mxu0 %v2777
        %2787 = vmatprep.subr.mxu0 0.0
        %2788 = vmatpush1.msra.mxu0 %v2776
        %2789 = vmatprep.subr.mxu0 0.0
        %2790 = vmatpush1.msra.mxu0 %v2775
        %2791 = vmatprep.subr.mxu0 0.0
        %2792 = vmatpush1.msra.mxu0 %v2774
        %2793 = vmatprep.subr.mxu0 0.0
        %2794 = vmatpush1.msra.mxu0 %v2773
        %2795 = vmatprep.subr.mxu0 0.0
        %2796 = vmatpush1.msra.mxu0 %v2772
        %2797 = vmatprep.subr.mxu0 0.0
        %2798 = vmatpush1.msra.mxu0 %v2771
        %2799 = vmatprep.subr.mxu0 0.0
        %2800 = vmatpush1.msra.mxu0 %v2770
        %2801 = vmatprep.subr.mxu0 0.0
        %2802 = vmatpush1.msra.mxu0 %v2769
        %2803 = vmatprep.subr.mxu0 0.0
        %2804 = vmatpush1.msra.mxu0 %v2768
        %2805 = vmatprep.subr.mxu0 0.0
        %2806 = vmatpush1.msra.mxu0 %v2767
        %2807 = vmatprep.subr.mxu0 0.0
        %2808 = vmatpush1.msra.mxu0 %v2766
        %2809 = vmatprep.subr.mxu0 0.0
        %2810 = vmatpush1.msra.mxu0 %v2765
        %2811 = vmatprep.subr.mxu0 0.0
        %2812 = vmatpush1.msra.mxu0 %v2764
        %2813 = vmatprep.subr.mxu0 0.0
        %2814 = vmatpush2.msra.mxu0 0.0
        %2815 = vmatprep.subr.mxu0 0.0
        %2816 = vmatpush2.msra.mxu0 0.0
        %2817 = vmatprep.subr.mxu0 0.0
        %2818 = vmatpush2.msra.mxu0 0.0
        %2819 = vmatprep.subr.mxu0 0.0
        %2820 = vmatpush2.msra.mxu0 0.0
        %2821 = vmatprep.subr.mxu0 0.0
        %2822 = vmatpush2.msra.mxu0 0.0
        %2823 = vmatprep.subr.mxu0 0.0
        %2824 = vmatpush2.msra.mxu0 0.0
        %2825 = vmatprep.subr.mxu0 0.0
        %2826 = vmatpush2.msra.mxu0 0.0
        %2827 = vmatprep.subr.mxu0 0.0
        %2828 = vmatpush2.msra.mxu0 0.0
        %2829 = vmatprep.subr.mxu0 0.0
        %2830 = vmatpush2.msra.mxu0 0.0
        %2831 = vmatprep.subr.mxu0 0.0
        %2832 = vmatpush2.msra.mxu0 0.0
        %2833 = vmatprep.subr.mxu0 0.0
        %2834 = vmatpush2.msra.mxu0 0.0
        %2835 = vmatprep.subr.mxu0 0.0
        %2836 = vmatpush2.msra.mxu0 0.0
        %2837 = vmatprep.subr.mxu0 0.0
        %2838 = vmatpush2.msra.mxu0 0.0
        %2839 = vmatprep.subr.mxu0 0.0
        %2840 = vmatpush2.msra.mxu0 0.0
        %2841 = vmatprep.subr.mxu0 0.0
        %2842 = vmatpush2.msra.mxu0 0.0
        %2843 = vmatprep.subr.mxu0 0.0
        %2844 = vmatpush2.msra.mxu0 0.0
        %2845 = vmatprep.mubr.f32.mxu0 0.0
        %2846 = vmatmul.mubr.f32.gmra.mxu0 %v2763
        %v2847 = vpop.f32.mrf.mxu0
        %v2848 = vadd.f32 %v2780, %v2847
        %v2849 = vpop.f32.mrf.mxu0
        %2850 = vdwg.mxu0
        %v2851 = vmax.f32 %v2848, 0.0
        %v2852 = vld [vmem:[%s7] sm:$0xff]
        %v2853 = vld [vmem:[%s7 + $0x8] sm:$0xff]
        %v2854 = vld [vmem:[%s7 + $0x10] sm:$0xff]
        %v2855 = vld [vmem:[%s7 + $0x18] sm:$0xff]
        %v2856 = vld [vmem:[%s7 + $0x20] sm:$0xff]
        %v2857 = vld [vmem:[%s7 + $0x28] sm:$0xff]
        %v2858 = vld [vmem:[%s7 + $0x30] sm:$0xff]
        %v2859 = vld [vmem:[%s7 + $0x38] sm:$0xff]
        %v2860 = vld [vmem:[%s7 + $0x40] sm:$0xff]
        %v2861 = vld [vmem:[%s7 + $0x48] sm:$0xff]
        %v2862 = vld [vmem:[%s7 + $0x50] sm:$0xff]
        %v2863 = vld [vmem:[%s7 + $0x58] sm:$0xff]
        %v2864 = vld [vmem:[%s7 + $0x60] sm:$0xff]
        %v2865 = vld [vmem:[%s7 + $0x68] sm:$0xff]
        %v2866 = vld [vmem:[%s7 + $0x70] sm:$0xff]
        %v2867 = vld [vmem:[%s7 + $0x78] sm:$0xff]
        %v2868 = vld [vmem:[%s8] sm:$0x1]
        %2869 = vmatprep.subr.mxu0 0.0
        %2870 = vmatpush1.msra.mxu0 %v2867
        %2871 = vmatprep.subr.mxu0 0.0
        %2872 = vmatpush1.msra.mxu0 %v2866
        %2873 = vmatprep.subr.mxu0 0.0
        %2874 = vmatpush1.msra.mxu0 %v2865
        %2875 = vmatprep.subr.mxu0 0.0
        %2876 = vmatpush1.msra.mxu0 %v2864
        %2877 = vmatprep.subr.mxu0 0.0
        %2878 = vmatpush1.msra.mxu0 %v2863
        %2879 = vmatprep.subr.mxu0 0.0
        %2880 = vmatpush1.msra.mxu0 %v2862
        %2881 = vmatprep.subr.mxu0 0.0
        %2882 = vmatpush1.msra.mxu0 %v2861
        %2883 = vmatprep.subr.mxu0 0.0
        %2884 = vmatpush1.msra.mxu0 %v2860
        %2885 = vmatprep.subr.mxu0 0.0
        %2886 = vmatpush1.msra.mxu0 %v2859
        %2887 = vmatprep.subr.mxu0 0.0
        %2888 = vmatpush1.msra.mxu0 %v2858
        %2889 = vmatprep.subr.mxu0 0.0
        %2890 = vmatpush1.msra.mxu0 %v2857
        %2891 = vmatprep.subr.mxu0 0.0
        %2892 = vmatpush1.msra.mxu0 %v2856
        %2893 = vmatprep.subr.mxu0 0.0
        %2894 = vmatpush1.msra.mxu0 %v2855
        %2895 = vmatprep.subr.mxu0 0.0
        %2896 = vmatpush1.msra.mxu0 %v2854
        %2897 = vmatprep.subr.mxu0 0.0
        %2898 = vmatpush1.msra.mxu0 %v2853
        %2899 = vmatprep.subr.mxu0 0.0
        %2900 = vmatpush1.msra.mxu0 %v2852
        %2901 = vmatprep.subr.mxu0 0.0
        %2902 = vmatpush2.msra.mxu0 0.0
        %2903 = vmatprep.subr.mxu0 0.0
        %2904 = vmatpush2.msra.mxu0 0.0
        %2905 = vmatprep.subr.mxu0 0.0
        %2906 = vmatpush2.msra.mxu0 0.0
        %2907 = vmatprep.subr.mxu0 0.0
        %2908 = vmatpush2.msra.mxu0 0.0
        %2909 = vmatprep.subr.mxu0 0.0
        %2910 = vmatpush2.msra.mxu0 0.0
        %2911 = vmatprep.subr.mxu0 0.0
        %2912 = vmatpush2.msra.mxu0 0.0
        %2913 = vmatprep.subr.mxu0 0.0
        %2914 = vmatpush2.msra.mxu0 0.0
        %2915 = vmatprep.subr.mxu0 0.0
        %2916 = vmatpush2.msra.mxu0 0.0
        %2917 = vmatprep.subr.mxu0 0.0
        %2918 = vmatpush2.msra.mxu0 0.0
        %2919 = vmatprep.subr.mxu0 0.0
        %2920 = vmatpush2.msra.mxu0 0.0
        %2921 = vmatprep.subr.mxu0 0.0
        %2922 = vmatpush2.msra.mxu0 0.0
        %2923 = vmatprep.subr.mxu0 0.0
        %2924 = vmatpush2.msra.mxu0 0.0
        %2925 = vmatprep.subr.mxu0 0.0
        %2926 = vmatpush2.msra.mxu0 0.0
        %2927 = vmatprep.subr.mxu0 0.0
        %2928 = vmatpush2.msra.mxu0 0.0
        %2929 = vmatprep.subr.mxu0 0.0
        %2930 = vmatpush2.msra.mxu0 0.0
        %2931 = vmatprep.subr.mxu0 0.0
        %2932 = vmatpush2.msra.mxu0 0.0
        %2933 = vmatprep.mubr.f32.mxu0 0.0
        %2934 = vmatmul.mubr.f32.gmra.mxu0 %v2851
        %v2935 = vpop.f32.mrf.mxu0
        %v2936 = vadd.f32 %v2868, %v2935
        %v2937 = vpop.f32.mrf.mxu0
        %2938 = vdwg.mxu0
        %v2939 = vxor.u32 %v2936, 2147483648
        %v2940 = vmul.f32 %v2939, 1.442695
        %v2941 = vpow.pop %v2940
        %v2942 = vadd.f32 %v2941, 1.0
        %v2943 = vrcp.pop %v2942
        %v2944 = vmul.f32 1.0, %v2943
        %v2945 = vld [vmem:[%s947 + $0x1] sm:$0xff]
        %v2946 = vld [vmem:[%s947 + $0x9] sm:$0xff]
        %v2947 = vld [vmem:[%s947 + $0x19] sm:$0xff]
        %v2948 = vld [vmem:[%s947 + $0x21] sm:$0xff]
        %v2949 = vld [vmem:[%s947 + $0x31] sm:$0xff]
        %v2950 = vld [vmem:[%s947 + $0x39] sm:$0xff]
        %v2951 = vld [vmem:[%s947 + $0x49] sm:$0xff]
        %v2952 = vld [vmem:[%s947 + $0x51] sm:$0xff]
        %v2953 = vld [vmem:[%s947 + $0x61] sm:$0xff]
        %v2954 = vld [vmem:[%s947 + $0x69] sm:$0xff]
        %v2955 = vld [vmem:[%s947 + $0x79] sm:$0xff]
        %v2956 = vld [vmem:[%s947 + $0x81] sm:$0xff]
        %v2957 = vld [vmem:[%s947 + $0x91] sm:$0xff]
        %v2958 = vld [vmem:[%s947 + $0x99] sm:$0xff]
        %v2959 = vld [vmem:[%s947 + $0xa9] sm:$0xff]
        %v2960 = vld [vmem:[%s947 + $0xb1] sm:$0xff]
        %v2961 = vld [vmem:[%s947 + $0xc1] sm:$0xff]
        %v2962 = vld [vmem:[%s947 + $0xc9] sm:$0xff]
        %v2963 = vld [vmem:[%s947 + $0xd9] sm:$0xff]
        %v2964 = vld [vmem:[%s947 + $0xe1] sm:$0xff]
        %v2965 = vld [vmem:[%s947 + $0xf1] sm:$0xff]
        %v2966 = vld [vmem:[%s947 + $0xf9] sm:$0xff]
        %v2967 = vld [vmem:[%s947 + $0x109] sm:$0xff]
        %v2968 = vld [vmem:[%s947 + $0x111] sm:$0xff]
        %v2969 = vld [vmem:[%s947 + $0x121] sm:$0xff]
        %v2970 = vld [vmem:[%s947 + $0x129] sm:$0xff]
        %v2971 = vld [vmem:[%s947 + $0x139] sm:$0xff]
        %v2972 = vld [vmem:[%s947 + $0x141] sm:$0xff]
        %v2973 = vld [vmem:[%s947 + $0x151] sm:$0xff]
        %v2974 = vld [vmem:[%s947 + $0x159] sm:$0xff]
        %v2975 = vld [vmem:[%s947 + $0x169] sm:$0xff]
        %v2976 = vld [vmem:[%s947 + $0x171] sm:$0xff]
        %v2977 = vlaneseq
        %v2978 = vshrl.u32 %v2977, 7
        %v2979 = vsub.s32 0, %v2978
        %v2980 = vrot.slane %v2944, %v2979
        %v2981 = vmul.f32 %v2693, %v2980
        %v2982 = vmul.f32 %v2694, %v2980
        %v2983 = vmul.f32 %v2695, %v2980
        %v2984 = vmul.f32 %v2696, %v2980
        %v2985 = vmul.f32 %v2697, %v2980
        %v2986 = vmul.f32 %v2698, %v2980
        %v2987 = vmul.f32 %v2699, %v2980
        %v2988 = vmul.f32 %v2700, %v2980
        %v2989 = vmul.f32 %v2701, %v2980
        %v2990 = vmul.f32 %v2702, %v2980
        %v2991 = vmul.f32 %v2703, %v2980
        %v2992 = vmul.f32 %v2704, %v2980
        %v2993 = vmul.f32 %v2705, %v2980
        %v2994 = vmul.f32 %v2706, %v2980
        %v2995 = vmul.f32 %v2707, %v2980
        %v2996 = vmul.f32 %v2708, %v2980
        %v2997 = vmul.f32 %v2709, %v2980
        %v2998 = vmul.f32 %v2710, %v2980
        %v2999 = vmul.f32 %v2711, %v2980
        %v3000 = vmul.f32 %v2712, %v2980
        %v3001 = vmul.f32 %v2713, %v2980
        %v3002 = vmul.f32 %v2714, %v2980
        %v3003 = vmul.f32 %v2715, %v2980
        %v3004 = vmul.f32 %v2716, %v2980
        %v3005 = vmul.f32 %v2717, %v2980
        %v3006 = vmul.f32 %v2718, %v2980
        %v3007 = vmul.f32 %v2719, %v2980
        %v3008 = vmul.f32 %v2720, %v2980
        %v3009 = vmul.f32 %v2721, %v2980
        %v3010 = vmul.f32 %v2722, %v2980
        %v3011 = vmul.f32 %v2723, %v2980
        %v3012 = vmul.f32 %v2724, %v2980
        %v3013 = vadd.f32 %v2981, %v2945
        %v3014 = vadd.f32 %v2982, %v2946
        %v3015 = vadd.f32 %v2983, %v2947
        %v3016 = vadd.f32 %v2984, %v2948
        %v3017 = vadd.f32 %v2985, %v2949
        %v3018 = vadd.f32 %v2986, %v2950
        %v3019 = vadd.f32 %v2987, %v2951
        %v3020 = vadd.f32 %v2988, %v2952
        %v3021 = vadd.f32 %v2989, %v2953
        %v3022 = vadd.f32 %v2990, %v2954
        %v3023 = vadd.f32 %v2991, %v2955
        %v3024 = vadd.f32 %v2992, %v2956
        %v3025 = vadd.f32 %v2993, %v2957
        %v3026 = vadd.f32 %v2994, %v2958
        %v3027 = vadd.f32 %v2995, %v2959
        %v3028 = vadd.f32 %v2996, %v2960
        %v3029 = vadd.f32 %v2997, %v2961
        %v3030 = vadd.f32 %v2998, %v2962
        %v3031 = vadd.f32 %v2999, %v2963
        %v3032 = vadd.f32 %v3000, %v2964
        %v3033 = vadd.f32 %v3001, %v2965
        %v3034 = vadd.f32 %v3002, %v2966
        %v3035 = vadd.f32 %v3003, %v2967
        %v3036 = vadd.f32 %v3004, %v2968
        %v3037 = vadd.f32 %v3005, %v2969
        %v3038 = vadd.f32 %v3006, %v2970
        %v3039 = vadd.f32 %v3007, %v2971
        %v3040 = vadd.f32 %v3008, %v2972
        %v3041 = vadd.f32 %v3009, %v2973
        %v3042 = vadd.f32 %v3010, %v2974
        %v3043 = vadd.f32 %v3011, %v2975
        %v3044 = vadd.f32 %v3012, %v2976
        %3045 = vst [vmem:[%s325] sm:$0xff] %v3013
        %3046 = vst [vmem:[%s325 + $0x8] sm:$0xff] %v3014
        %3047 = vst [vmem:[%s325 + $0x10] sm:$0xff] %v3015
        %3048 = vst [vmem:[%s325 + $0x18] sm:$0xff] %v3016
        %3049 = vst [vmem:[%s325 + $0x20] sm:$0xff] %v3017
        %3050 = vst [vmem:[%s325 + $0x28] sm:$0xff] %v3018
        %3051 = vst [vmem:[%s325 + $0x30] sm:$0xff] %v3019
        %3052 = vst [vmem:[%s325 + $0x38] sm:$0xff] %v3020
        %3053 = vst [vmem:[%s325 + $0x40] sm:$0xff] %v3021
        %3054 = vst [vmem:[%s325 + $0x48] sm:$0xff] %v3022
        %3055 = vst [vmem:[%s325 + $0x50] sm:$0xff] %v3023
        %3056 = vst [vmem:[%s325 + $0x58] sm:$0xff] %v3024
        %3057 = vst [vmem:[%s325 + $0x60] sm:$0xff] %v3025
        %3058 = vst [vmem:[%s325 + $0x68] sm:$0xff] %v3026
        %3059 = vst [vmem:[%s325 + $0x70] sm:$0xff] %v3027
        %3060 = vst [vmem:[%s325 + $0x78] sm:$0xff] %v3028
        %3061 = vst [vmem:[%s325 + $0x80] sm:$0xff] %v3029
        %3062 = vst [vmem:[%s325 + $0x88] sm:$0xff] %v3030
        %3063 = vst [vmem:[%s325 + $0x90] sm:$0xff] %v3031
        %3064 = vst [vmem:[%s325 + $0x98] sm:$0xff] %v3032
        %3065 = vst [vmem:[%s325 + $0xa0] sm:$0xff] %v3033
        %3066 = vst [vmem:[%s325 + $0xa8] sm:$0xff] %v3034
        %3067 = vst [vmem:[%s325 + $0xb0] sm:$0xff] %v3035
        %3068 = vst [vmem:[%s325 + $0xb8] sm:$0xff] %v3036
        %3069 = vst [vmem:[%s325 + $0xc0] sm:$0xff] %v3037
        %3070 = vst [vmem:[%s325 + $0xc8] sm:$0xff] %v3038
        %3071 = vst [vmem:[%s325 + $0xd0] sm:$0xff] %v3039
        %3072 = vst [vmem:[%s325 + $0xd8] sm:$0xff] %v3040
        %3073 = vst [vmem:[%s325 + $0xe0] sm:$0xff] %v3041
        %3074 = vst [vmem:[%s325 + $0xe8] sm:$0xff] %v3042
        %3075 = vst [vmem:[%s325 + $0xf0] sm:$0xff] %v3043
        %3076 = vst [vmem:[%s325 + $0xf8] sm:$0xff] %v3044
        %s3077 = sand.u32 %s225, 1
        %s3078 = scalar_lea.sflag [#allocation3], %s3077
        %s3079 = sand.u32 %s225, 1
        %s3080 = smul.addr %s3079, 256
        %s3081 = scalar_lea.vmem [#allocation2], %s3080
        // Predicated region
        $region57: #{tpu_custom_call.1} parent=55 // pred_check
          %p3082 = pneg %p235
        $region58: #{tpu_custom_call.1} parent=55 // pred_check_branch
          %3084 = sbr.rel (%p3082) target = $region60
        $region59: #{tpu_custom_call.1} parent=55 // pred_region
          %s3086 = ssub.s32 4096, 4096
          %3087 = vsyncadd %s3078, %s3086
          %s3088 = smul.addr %s23, 32
          %s3089 = smul.addr %s3088, 128
          %s3090 = scalar_lea.hbm %s9, %s3089
          %s3091 = sshll.u32 %s3081, 4
          %s3092 = int_to_ptr.vmem [resolvable:$true] %s3091
          %3097 = dma.vmem_to_hbm [thread:$0]  %s3092, 4096, %s3090, %s3078, 128, 128, 8
        $region60: #{tpu_custom_call.1} parent=55 // pred_fallthru
          _
      $region56: #{tpu_custom_call.1} parent=5 // pred_fallthru
        _
      %p3098 = scmp.le.s32.totalorder 2, %s18
      // Predicated region
      $region61: #{tpu_custom_call.1} parent=5 // pred_check
        %p3099 = pneg %p3098
      $region62: #{tpu_custom_call.1} parent=5 // pred_check_branch
        %3101 = sbr.rel (%p3099) target = $region64
      $region63: #{tpu_custom_call.1} parent=5 // pred_region
        %s3102 = ssub.s32 %s18, 2
        // Predicated region
        $region65: #{tpu_custom_call.1} parent=63 // pred_check
          %p3103 = pneg %p241
        $region66: #{tpu_custom_call.1} parent=63 // pred_check_branch
          %3105 = sbr.rel (%p3103) target = $region68
        $region67: #{tpu_custom_call.1} parent=63 // pred_region
          %s3106 = sand.u32 %s226, 1
          %s3107 = scalar_lea.sflag [#allocation3], %s3106
          %s3108 = sand.u32 %s226, 1
          %s3109 = smul.addr %s3108, 256
          %s3110 = scalar_lea.vmem [#allocation2], %s3109
          %3111 = dma.done %s3107, 4096
        $region68: #{tpu_custom_call.1} parent=63 // pred_fallthru
          _
      $region64: #{tpu_custom_call.1} parent=5 // pred_fallthru
        _
    $region6: #{tpu_custom_call.1} parent=1 // loop_footer
      %s22 = sadd.s32 1, %s18
    $region7: #{tpu_custom_call.1} parent=1 // loop_footer_branch
      %17 = sbr.rel target = $region3
    $region8: #{tpu_custom_call.1} parent=1 // loop_exit
      _
    %3112 = vsyncpa [#allocation3], 1
    %s3113 = scalar_lea.sflag [#allocation3], 1
    %3114 = vsyncpa %s3113, 1

</llo_original>
